<compile_context>
chip_gen: v5e
topology: v5e:2x2
jax: 0.10.0
libtpu: 0.0.40
codegen_flags: <defaults>
</compile_context>

<pallas_src>
import functools

import jax
import jax.numpy as jnp
from jax.experimental import pallas as pl
from jax.experimental.pallas import tpu as pltpu


def _round_up(x, m):
    return (x + m - 1) // m * m


def _conv_kernel(x_ref, w_ref, b_ref, o_ref, *, K, W_pad, Cout, L_out):
    # x_ref: (1, Cin, L_in)    flat upsampled+reflect-padded image (zero tail)
    # w_ref: (K*K, Cout, Cin)  per-tap weight slabs
    # b_ref: (Cout, 1)
    # o_ref: (1, Cout, L_out)  flat stride-1 conv output at padded-row positions
    acc = jnp.zeros((Cout, L_out), dtype=jnp.float32)
    for kh in range(K):
        for kw in range(K):
            shift = kh * W_pad + kw
            # Lane-offset slice of the resident slab: (Cin, L_out). No reshape,
            # no relayout; just a (possibly unaligned) lane shift on load.
            xs = x_ref[0, :, pl.ds(shift, L_out)]
            acc = acc + jnp.dot(
                w_ref[kh * K + kw], xs, preferred_element_type=jnp.float32
            )
    # (Cout, 1) bias broadcasts along lanes; store is fully lane-dense.
    o_ref[0] = (acc + b_ref[...]).astype(o_ref.dtype)


def upsample_conv_layer(x_nchw, weight, bias, *, kernel_size, stride, upsample=None):
    """Forward pass matching torch UpsampleConvLayer.

    x_nchw : (N, Cin, H, W) float32
    weight : (Cout, Cin, K, K) float32   (PyTorch conv weight layout)
    bias   : (Cout,) float32
    returns: (N, Cout, H_out, W_out) float32
    """
    N, Cin, H, W = x_nchw.shape
    Cout = weight.shape[0]
    K = kernel_size
    pad = K // 2
    scale = upsample if upsample else 1

    Hu, Wu = H * scale, W * scale
    H_pad, W_pad = Hu + 2 * pad, Wu + 2 * pad

    # --- glue: fused nearest-upsample + reflection-pad as one gather ---------
    # torch.nn.ReflectionPad2d (edge not duplicated) applied at upsampled
    # resolution, then nearest map u -> u // scale back to the original pixel.
    def _src_idx(n_up):
        u = jnp.arange(-pad, n_up + pad)
        u = jnp.where(u < 0, -u, u)                       # reflect low side
        u = jnp.where(u >= n_up, 2 * (n_up - 1) - u, u)   # reflect high side
        return u // scale

    row_idx = _src_idx(Hu)                                # (H_pad,)
    col_idx = _src_idx(Wu)                                # (W_pad,)
    x_pad = jnp.take(x_nchw, row_idx, axis=2)
    x_pad = jnp.take(x_pad, col_idx, axis=3)              # (N, Cin, H_pad, W_pad)

    # Flatten spatial to a lane-dense vector; zero-pad so every in-kernel
    # slice (max shift = (K-1)*(W_pad+1)) stays in bounds and 128-aligned.
    Hv, Wv = H_pad - K + 1, W_pad - K + 1                 # stride-1 valid output
    L_out = _round_up(Hv * W_pad, 128)
    L_in = _round_up(L_out + (K - 1) * (W_pad + 1), 128)
    x_flat = x_pad.reshape(N, Cin, H_pad * W_pad)
    x_flat = jnp.pad(x_flat, ((0, 0), (0, 0), (0, L_in - H_pad * W_pad)))

    # weight -> (K*K, Cout, Cin); bias -> (Cout, 1) for lane broadcast.
    w = jnp.transpose(weight, (2, 3, 0, 1)).reshape(K * K, Cout, Cin)
    b = bias.reshape(Cout, 1)

    kernel = functools.partial(
        _conv_kernel, K=K, W_pad=W_pad, Cout=Cout, L_out=L_out
    )

    out_flat = pl.pallas_call(
        kernel,
        out_shape=jax.ShapeDtypeStruct((N, Cout, L_out), x_nchw.dtype),
        grid_spec=pltpu.PrefetchScalarGridSpec(
            num_scalar_prefetch=0,
            grid=(N,),
            in_specs=[
                pl.BlockSpec((1, Cin, L_in), lambda n: (n, 0, 0)),
                pl.BlockSpec((K * K, Cout, Cin), lambda n: (0, 0, 0)),
                pl.BlockSpec((Cout, 1), lambda n: (0, 0)),
            ],
            out_specs=pl.BlockSpec((1, Cout, L_out), lambda n: (n, 0, 0)),
        ),
        compiler_params=pltpu.CompilerParams(dimension_semantics=("parallel",)),
    )(x_flat, w, b)

    # Valid stride-1 outputs live at p = h * W_pad + w; cheap contiguous
    # reshape + slice back to NCHW (already channel-major -> no transpose).
    v = out_flat[:, :, : Hv * W_pad].reshape(N, Cout, Hv, W_pad)[:, :, :, :Wv]
    if stride != 1:
        v = v[:, :, ::stride, ::stride]
    return v


if __name__ == "__main__":
    # Module config consistent with the forward: in=4, out=8, k=3, stride=1, upsample=2
    in_channels, out_channels, kernel_size, stride, upsample = 4, 8, 3, 1, 2

    key = jax.random.PRNGKey(0)
    kx, kw, kb = jax.random.split(key, 3)

    x = jax.random.normal(kx, (2, in_channels, 16, 16), dtype=jnp.float32)
    # Deterministic parameter init (same shapes as torch.nn.Conv2d(in, out, k)).
    fan_in = in_channels * kernel_size * kernel_size
    bound = 1.0 / (fan_in ** 0.5)
    weight = jax.random.uniform(
        kw, (out_channels, in_channels, kernel_size, kernel_size),
        minval=-bound, maxval=bound, dtype=jnp.float32)
    bias = jax.random.uniform(kb, (out_channels,), minval=-bound, maxval=bound,
                              dtype=jnp.float32)

    fwd = jax.jit(functools.partial(
        upsample_conv_layer, kernel_size=kernel_size, stride=stride,
        upsample=upsample))
    out = fwd(x, weight, bias)
    jax.block_until_ready(out)

    # Sanity check against XLA's conv on the same upsampled+padded input.
    x_up = jnp.repeat(jnp.repeat(x, upsample, axis=2), upsample, axis=3)
    x_padded = jnp.pad(
        x_up, ((0, 0), (0, 0), (kernel_size // 2,) * 2, (kernel_size // 2,) * 2),
        mode="reflect")
    ref = jax.lax.conv_general_dilated(
        x_padded, weight, window_strides=(stride, stride), padding="VALID",
        dimension_numbers=("NCHW", "OIHW", "NCHW"),
    ) + bias.reshape(1, -1, 1, 1)
    assert out.shape == ref.shape, (out.shape, ref.shape)
    assert jnp.allclose(out, ref, atol=1e-4, rtol=1e-4)

    print("KERNEL_OK")
</pallas_src>

<mosaic_0001>
module attributes {stable_mosaic.version = 11 : i64} {
  func.func @_conv_kernel(%arg0: i32, %arg1: memref<1x4x1280xf32, #tpu.memory_space<vmem>>, %arg2: memref<9x8x4xf32, #tpu.memory_space<vmem>>, %arg3: memref<8x1xf32, #tpu.memory_space<vmem>>, %arg4: memref<1x8x1152xf32, #tpu.memory_space<vmem>>) attributes {dimension_semantics = [#tpu.dimension_semantics<parallel>], iteration_bounds = array<i64: 2>, scalar_prefetch = 0 : i64, scratch_operands = 0 : i64, tpu.core_type = #tpu.core_type<tc>, window_params = [{transform_indices = @transform_0, window_bounds = array<i64: 1, 4, 1280>}, {pipeline_mode = #tpu.pipeline_mode<synchronous>, transform_indices = @transform_1, window_bounds = array<i64: 9, 8, 4>}, {pipeline_mode = #tpu.pipeline_mode<synchronous>, transform_indices = @transform_2, window_bounds = array<i64: 8, 1>}, {transform_indices = @transform_3, window_bounds = array<i64: 1, 8, 1152>}]} {
    %cst = arith.constant 0.000000e+00 : f32
    %0 = vector.broadcast %cst : f32 to vector<8x1152xf32>
    %c0 = arith.constant 0 : index
    %c0_0 = arith.constant 0 : index
    %c0_1 = arith.constant 0 : index
    %1 = vector.load %arg1[%c0, %c0_0, %c0_1] : memref<1x4x1280xf32, #tpu.memory_space<vmem>>, vector<1x4x1152xf32>
    %2 = vector.shape_cast %1 : vector<1x4x1152xf32> to vector<4x1152xf32>
    %c0_2 = arith.constant 0 : index
    %c0_3 = arith.constant 0 : index
    %c0_4 = arith.constant 0 : index
    %3 = vector.load %arg2[%c0_2, %c0_3, %c0_4] : memref<9x8x4xf32, #tpu.memory_space<vmem>>, vector<1x8x4xf32>
    %4 = vector.shape_cast %3 : vector<1x8x4xf32> to vector<8x4xf32>
    %cst_5 = arith.constant dense<0.000000e+00> : vector<8x1152xf32>
    %5 = tpu.matmul %4, %2, %cst_5 {dimension_numbers = #tpu.dot_dimension_numbers<[1], [0], [0], [1], [0, 0, 1, 1], [], []>} : vector<8x4xf32>, vector<4x1152xf32>, vector<8x1152xf32> -> vector<8x1152xf32>
    %6 = arith.addf %0, %5 : vector<8x1152xf32>
    %c0_6 = arith.constant 0 : index
    %c0_7 = arith.constant 0 : index
    %c1 = arith.constant 1 : index
    %7 = vector.load %arg1[%c0_6, %c0_7, %c1] : memref<1x4x1280xf32, #tpu.memory_space<vmem>>, vector<1x4x1152xf32>
    %8 = vector.shape_cast %7 : vector<1x4x1152xf32> to vector<4x1152xf32>
    %c1_8 = arith.constant 1 : index
    %c0_9 = arith.constant 0 : index
    %c0_10 = arith.constant 0 : index
    %9 = vector.load %arg2[%c1_8, %c0_9, %c0_10] : memref<9x8x4xf32, #tpu.memory_space<vmem>>, vector<1x8x4xf32>
    %10 = vector.shape_cast %9 : vector<1x8x4xf32> to vector<8x4xf32>
    %cst_11 = arith.constant dense<0.000000e+00> : vector<8x1152xf32>
    %11 = tpu.matmul %10, %8, %cst_11 {dimension_numbers = #tpu.dot_dimension_numbers<[1], [0], [0], [1], [0, 0, 1, 1], [], []>} : vector<8x4xf32>, vector<4x1152xf32>, vector<8x1152xf32> -> vector<8x1152xf32>
    %12 = arith.addf %6, %11 : vector<8x1152xf32>
    %c0_12 = arith.constant 0 : index
    %c0_13 = arith.constant 0 : index
    %c2 = arith.constant 2 : index
    %13 = vector.load %arg1[%c0_12, %c0_13, %c2] : memref<1x4x1280xf32, #tpu.memory_space<vmem>>, vector<1x4x1152xf32>
    %14 = vector.shape_cast %13 : vector<1x4x1152xf32> to vector<4x1152xf32>
    %c2_14 = arith.constant 2 : index
    %c0_15 = arith.constant 0 : index
    %c0_16 = arith.constant 0 : index
    %15 = vector.load %arg2[%c2_14, %c0_15, %c0_16] : memref<9x8x4xf32, #tpu.memory_space<vmem>>, vector<1x8x4xf32>
    %16 = vector.shape_cast %15 : vector<1x8x4xf32> to vector<8x4xf32>
    %cst_17 = arith.constant dense<0.000000e+00> : vector<8x1152xf32>
    %17 = tpu.matmul %16, %14, %cst_17 {dimension_numbers = #tpu.dot_dimension_numbers<[1], [0], [0], [1], [0, 0, 1, 1], [], []>} : vector<8x4xf32>, vector<4x1152xf32>, vector<8x1152xf32> -> vector<8x1152xf32>
    %18 = arith.addf %12, %17 : vector<8x1152xf32>
    %c0_18 = arith.constant 0 : index
    %c0_19 = arith.constant 0 : index
    %c34 = arith.constant 34 : index
    %19 = vector.load %arg1[%c0_18, %c0_19, %c34] : memref<1x4x1280xf32, #tpu.memory_space<vmem>>, vector<1x4x1152xf32>
    %20 = vector.shape_cast %19 : vector<1x4x1152xf32> to vector<4x1152xf32>
    %c3 = arith.constant 3 : index
    %c0_20 = arith.constant 0 : index
    %c0_21 = arith.constant 0 : index
    %21 = vector.load %arg2[%c3, %c0_20, %c0_21] : memref<9x8x4xf32, #tpu.memory_space<vmem>>, vector<1x8x4xf32>
    %22 = vector.shape_cast %21 : vector<1x8x4xf32> to vector<8x4xf32>
    %cst_22 = arith.constant dense<0.000000e+00> : vector<8x1152xf32>
    %23 = tpu.matmul %22, %20, %cst_22 {dimension_numbers = #tpu.dot_dimension_numbers<[1], [0], [0], [1], [0, 0, 1, 1], [], []>} : vector<8x4xf32>, vector<4x1152xf32>, vector<8x1152xf32> -> vector<8x1152xf32>
    %24 = arith.addf %18, %23 : vector<8x1152xf32>
    %c0_23 = arith.constant 0 : index
    %c0_24 = arith.constant 0 : index
    %c35 = arith.constant 35 : index
    %25 = vector.load %arg1[%c0_23, %c0_24, %c35] : memref<1x4x1280xf32, #tpu.memory_space<vmem>>, vector<1x4x1152xf32>
    %26 = vector.shape_cast %25 : vector<1x4x1152xf32> to vector<4x1152xf32>
    %c4 = arith.constant 4 : index
    %c0_25 = arith.constant 0 : index
    %c0_26 = arith.constant 0 : index
    %27 = vector.load %arg2[%c4, %c0_25, %c0_26] : memref<9x8x4xf32, #tpu.memory_space<vmem>>, vector<1x8x4xf32>
    %28 = vector.shape_cast %27 : vector<1x8x4xf32> to vector<8x4xf32>
    %cst_27 = arith.constant dense<0.000000e+00> : vector<8x1152xf32>
    %29 = tpu.matmul %28, %26, %cst_27 {dimension_numbers = #tpu.dot_dimension_numbers<[1], [0], [0], [1], [0, 0, 1, 1], [], []>} : vector<8x4xf32>, vector<4x1152xf32>, vector<8x1152xf32> -> vector<8x1152xf32>
    %30 = arith.addf %24, %29 : vector<8x1152xf32>
    %c0_28 = arith.constant 0 : index
    %c0_29 = arith.constant 0 : index
    %c36 = arith.constant 36 : index
    %31 = vector.load %arg1[%c0_28, %c0_29, %c36] : memref<1x4x1280xf32, #tpu.memory_space<vmem>>, vector<1x4x1152xf32>
    %32 = vector.shape_cast %31 : vector<1x4x1152xf32> to vector<4x1152xf32>
    %c5 = arith.constant 5 : index
    %c0_30 = arith.constant 0 : index
    %c0_31 = arith.constant 0 : index
    %33 = vector.load %arg2[%c5, %c0_30, %c0_31] : memref<9x8x4xf32, #tpu.memory_space<vmem>>, vector<1x8x4xf32>
    %34 = vector.shape_cast %33 : vector<1x8x4xf32> to vector<8x4xf32>
    %cst_32 = arith.constant dense<0.000000e+00> : vector<8x1152xf32>
    %35 = tpu.matmul %34, %32, %cst_32 {dimension_numbers = #tpu.dot_dimension_numbers<[1], [0], [0], [1], [0, 0, 1, 1], [], []>} : vector<8x4xf32>, vector<4x1152xf32>, vector<8x1152xf32> -> vector<8x1152xf32>
    %36 = arith.addf %30, %35 : vector<8x1152xf32>
    %c0_33 = arith.constant 0 : index
    %c0_34 = arith.constant 0 : index
    %c68 = arith.constant 68 : index
    %37 = vector.load %arg1[%c0_33, %c0_34, %c68] : memref<1x4x1280xf32, #tpu.memory_space<vmem>>, vector<1x4x1152xf32>
    %38 = vector.shape_cast %37 : vector<1x4x1152xf32> to vector<4x1152xf32>
    %c6 = arith.constant 6 : index
    %c0_35 = arith.constant 0 : index
    %c0_36 = arith.constant 0 : index
    %39 = vector.load %arg2[%c6, %c0_35, %c0_36] : memref<9x8x4xf32, #tpu.memory_space<vmem>>, vector<1x8x4xf32>
    %40 = vector.shape_cast %39 : vector<1x8x4xf32> to vector<8x4xf32>
    %cst_37 = arith.constant dense<0.000000e+00> : vector<8x1152xf32>
    %41 = tpu.matmul %40, %38, %cst_37 {dimension_numbers = #tpu.dot_dimension_numbers<[1], [0], [0], [1], [0, 0, 1, 1], [], []>} : vector<8x4xf32>, vector<4x1152xf32>, vector<8x1152xf32> -> vector<8x1152xf32>
    %42 = arith.addf %36, %41 : vector<8x1152xf32>
    %c0_38 = arith.constant 0 : index
    %c0_39 = arith.constant 0 : index
    %c69 = arith.constant 69 : index
    %43 = vector.load %arg1[%c0_38, %c0_39, %c69] : memref<1x4x1280xf32, #tpu.memory_space<vmem>>, vector<1x4x1152xf32>
    %44 = vector.shape_cast %43 : vector<1x4x1152xf32> to vector<4x1152xf32>
    %c7 = arith.constant 7 : index
    %c0_40 = arith.constant 0 : index
    %c0_41 = arith.constant 0 : index
    %45 = vector.load %arg2[%c7, %c0_40, %c0_41] : memref<9x8x4xf32, #tpu.memory_space<vmem>>, vector<1x8x4xf32>
    %46 = vector.shape_cast %45 : vector<1x8x4xf32> to vector<8x4xf32>
    %cst_42 = arith.constant dense<0.000000e+00> : vector<8x1152xf32>
    %47 = tpu.matmul %46, %44, %cst_42 {dimension_numbers = #tpu.dot_dimension_numbers<[1], [0], [0], [1], [0, 0, 1, 1], [], []>} : vector<8x4xf32>, vector<4x1152xf32>, vector<8x1152xf32> -> vector<8x1152xf32>
    %48 = arith.addf %42, %47 : vector<8x1152xf32>
    %c0_43 = arith.constant 0 : index
    %c0_44 = arith.constant 0 : index
    %c70 = arith.constant 70 : index
    %49 = vector.load %arg1[%c0_43, %c0_44, %c70] : memref<1x4x1280xf32, #tpu.memory_space<vmem>>, vector<1x4x1152xf32>
    %50 = vector.shape_cast %49 : vector<1x4x1152xf32> to vector<4x1152xf32>
    %c8 = arith.constant 8 : index
    %c0_45 = arith.constant 0 : index
    %c0_46 = arith.constant 0 : index
    %51 = vector.load %arg2[%c8, %c0_45, %c0_46] : memref<9x8x4xf32, #tpu.memory_space<vmem>>, vector<1x8x4xf32>
    %52 = vector.shape_cast %51 : vector<1x8x4xf32> to vector<8x4xf32>
    %cst_47 = arith.constant dense<0.000000e+00> : vector<8x1152xf32>
    %53 = tpu.matmul %52, %50, %cst_47 {dimension_numbers = #tpu.dot_dimension_numbers<[1], [0], [0], [1], [0, 0, 1, 1], [], []>} : vector<8x4xf32>, vector<4x1152xf32>, vector<8x1152xf32> -> vector<8x1152xf32>
    %54 = arith.addf %48, %53 : vector<8x1152xf32>
    %c0_48 = arith.constant 0 : index
    %c0_49 = arith.constant 0 : index
    %55 = vector.load %arg3[%c0_48, %c0_49] : memref<8x1xf32, #tpu.memory_space<vmem>>, vector<8x1xf32>
    %56 = vector.broadcast %55 : vector<8x1xf32> to vector<8x1152xf32>
    %57 = arith.addf %54, %56 : vector<8x1152xf32>
    %c0_50 = arith.constant 0 : index
    %c0_51 = arith.constant 0 : index
    %c0_52 = arith.constant 0 : index
    %58 = vector.load %arg4[%c0_50, %c0_51, %c0_52] : memref<1x8x1152xf32, #tpu.memory_space<vmem>>, vector<1x8x1152xf32>
    %59 = vector.shape_cast %58 : vector<1x8x1152xf32> to vector<8x1152xf32>
    %60 = vector.shape_cast %57 : vector<8x1152xf32> to vector<1x8x1152xf32>
    tpu.vector_store %arg4[%c0_50, %c0_51, %c0_52], %60 {strides = array<i32>} : memref<1x8x1152xf32, #tpu.memory_space<vmem>>, vector<1x8x1152xf32>,
    return
  }
  func.func @transform_0(%arg0: i32) -> (i32, i32, i32) {
    %c0_i32 = arith.constant 0 : i32
    %c0_i32_0 = arith.constant 0 : i32
    %c0_i32_1 = arith.constant 0 : i32
    return %arg0, %c0_i32, %c0_i32_0 : i32, i32, i32
  }
  func.func @transform_1(%arg0: i32) -> (i32, i32, i32) {
    %c0_i32 = arith.constant 0 : i32
    %c0_i32_0 = arith.constant 0 : i32
    %c0_i32_1 = arith.constant 0 : i32
    %c0_i32_2 = arith.constant 0 : i32
    return %c0_i32, %c0_i32_0, %c0_i32_1 : i32, i32, i32
  }
  func.func @transform_2(%arg0: i32) -> (i32, i32) {
    %c0_i32 = arith.constant 0 : i32
    %c0_i32_0 = arith.constant 0 : i32
    %c0_i32_1 = arith.constant 0 : i32
    return %c0_i32, %c0_i32_0 : i32, i32
  }
  func.func @transform_3(%arg0: i32) -> (i32, i32, i32) {
    %c0_i32 = arith.constant 0 : i32
    %c0_i32_0 = arith.constant 0 : i32
    %c0_i32_1 = arith.constant 0 : i32
    return %arg0, %c0_i32, %c0_i32_0 : i32, i32, i32
  }
}

</mosaic_0001>

<llo_original>
// kernel: upsample_conv_layer.1
$region0: #{upsample_conv_layer.1}
  #allocation0 [shape = 'u32[]', space=smem, size = 0x4, offset = 0x4, fixed_abs, tag = 'smem constant byte address 0x4 - core index']
  #allocation1 [shape = 'u32[72,128]{1,0:T(1,128)}', space=vmem, size = 0x9000, scoped, tag = 'internal scratch']
  %s0 = inlined_call_operand.vmem [shape: f32[2,4,1280], index: 0, kind: input, shape index: {}]
  %s1 = inlined_call_operand.vmem [shape: f32[9,8,4], index: 1, kind: input, shape index: {}]
  %s2 = inlined_call_operand.vmem [shape: f32[8,1], index: 2, kind: input, shape index: {}]
  %s3 = inlined_call_operand.vmem [shape: f32[2,8,1152], index: 3, kind: output, shape index: {}]
  %s4 = sld [smem:[#allocation0]]
  $region45: #{upsample_conv_layer.1} parent=0
    _
  %s6 = ssub.s32 1, %s4
  %s7 = scalar_select 0, %s6, %s4
  loop: start=0, step=1, limit=4
  $region2: #{upsample_conv_layer.1} parent=0 // loop_pre_header
    _
  $region3: #{upsample_conv_layer.1} parent=0 // loop_header
    %s9 = sphi 0, %s13
    %p10 = scmp.ge.s32.totalorder %s9, 4
    %s19 = sphi 0, %s21
    %s22 = sphi 0, %s19
    %s23 = sphi 0, %s22
    %s39 = sphi 0, %s23
    %s43 = sphi 0, %s43
    %s45 = sphi 0, %s43
    %s46 = sphi 0, %s45
    %s60 = sphi 0, %s46
    %s64 = sphi 0, %s64
    %s66 = sphi 0, %s64
    %s67 = sphi 0, %s66
    %s81 = sphi 0, %s67
    %s87 = sphi 0, %s89
    %s90 = sphi 0, %s87
    %s91 = sphi 0, %s90
    %s107 = sphi 0, %s91
  $region4: #{upsample_conv_layer.1} parent=0 // loop_header_branch
    %12 = sbr.rel (%p10) target = $region8
  $region5: #{upsample_conv_layer.1} parent=0 // loop_body
    %s14 = ssub.s32 %s9, 1
    %s15 = ssub.s32 %s9, 2
    %s16 = sadd.s32 %s9, 1
    %s17 = ssub.s32 %s9, %s16
    %p18 = scmp.eq.s32.totalorder %s17, 0
    %s20 = sadd.s32 %s19, 1
    %s21 = scalar_select %p18, %s19, %s20
    %p24 = pneg %p18
    %p25 = scmp.eq.s32.totalorder %s9, 1
    %p26 = por %p24, %p25
    %p27 = scmp.ne.s32.totalorder %s19, %s22
    %p28 = scmp.eq.s32.totalorder %s9, 0
    %p29 = por %p27, %p28
    %p30 = scmp.ne.s32.totalorder %s19, %s22
    %p31 = scmp.eq.s32.totalorder %s14, 1
    %p32 = por %p30, %p31
    %p33 = scmp.ne.s32.totalorder %s22, %s23
    %p34 = scmp.eq.s32.totalorder %s14, 0
    %p35 = por %p33, %p34
    %p36 = scmp.ne.s32.totalorder %s22, %s23
    %p37 = scmp.eq.s32.totalorder %s15, 1
    %p38 = por %p36, %p37
    %p40 = scmp.ne.s32.totalorder %s23, %s39
    %p41 = scmp.eq.s32.totalorder %s15, 0
    %p42 = por %p40, %p41
    %s44 = sadd.s32 %s43, 1
    %p47 = scmp.eq.s32.totalorder %s9, 1
    %p48 = scmp.ne.s32.totalorder %s43, %s45
    %p49 = scmp.eq.s32.totalorder %s9, 0
    %p50 = por %p48, %p49
    %p51 = scmp.ne.s32.totalorder %s43, %s45
    %p52 = scmp.eq.s32.totalorder %s14, 1
    %p53 = por %p51, %p52
    %p54 = scmp.ne.s32.totalorder %s45, %s46
    %p55 = scmp.eq.s32.totalorder %s14, 0
    %p56 = por %p54, %p55
    %p57 = scmp.ne.s32.totalorder %s45, %s46
    %p58 = scmp.eq.s32.totalorder %s15, 1
    %p59 = por %p57, %p58
    %p61 = scmp.ne.s32.totalorder %s46, %s60
    %p62 = scmp.eq.s32.totalorder %s15, 0
    %p63 = por %p61, %p62
    %s65 = sadd.s32 %s64, 1
    %p68 = scmp.eq.s32.totalorder %s9, 1
    %p69 = scmp.ne.s32.totalorder %s64, %s66
    %p70 = scmp.eq.s32.totalorder %s9, 0
    %p71 = por %p69, %p70
    %p72 = scmp.ne.s32.totalorder %s64, %s66
    %p73 = scmp.eq.s32.totalorder %s14, 1
    %p74 = por %p72, %p73
    %p75 = scmp.ne.s32.totalorder %s66, %s67
    %p76 = scmp.eq.s32.totalorder %s14, 0
    %p77 = por %p75, %p76
    %p78 = scmp.ne.s32.totalorder %s66, %s67
    %p79 = scmp.eq.s32.totalorder %s15, 1
    %p80 = por %p78, %p79
    %p82 = scmp.ne.s32.totalorder %s67, %s81
    %p83 = scmp.eq.s32.totalorder %s15, 0
    %p84 = por %p82, %p83
    %s85 = ssub.s32 %s9, %s16
    %p86 = scmp.eq.s32.totalorder %s85, 0
    %s88 = sadd.s32 %s87, 1
    %s89 = scalar_select %p86, %s87, %s88
    %p92 = pneg %p86
    %p93 = scmp.eq.s32.totalorder %s9, 1
    %p94 = por %p92, %p93
    %p95 = scmp.ne.s32.totalorder %s87, %s90
    %p96 = scmp.eq.s32.totalorder %s9, 0
    %p97 = por %p95, %p96
    %p98 = scmp.ne.s32.totalorder %s87, %s90
    %p99 = scmp.eq.s32.totalorder %s14, 1
    %p100 = por %p98, %p99
    %p101 = scmp.ne.s32.totalorder %s90, %s91
    %p102 = scmp.eq.s32.totalorder %s14, 0
    %p103 = por %p101, %p102
    %p104 = scmp.ne.s32.totalorder %s90, %s91
    %p105 = scmp.eq.s32.totalorder %s15, 1
    %p106 = por %p104, %p105
    %p108 = scmp.ne.s32.totalorder %s91, %s107
    %p109 = scmp.eq.s32.totalorder %s15, 0
    %p110 = por %p108, %p109
    %p111 = scmp.le.s32.totalorder 1, %s9
    %p112 = scmp.lt.s32.totalorder %s9, 3
    %p113 = pnand %p111, %p112
    %p114 = pneg %p113
    // Predicated region
    $region9: #{upsample_conv_layer.1} parent=5 // pred_check
      _
    $region10: #{upsample_conv_layer.1} parent=5 // pred_check_branch
      %116 = sbr.rel (%p113) target = $region12
    $region11: #{upsample_conv_layer.1} parent=5 // pred_region
      %s117 = ssub.s32 %s9, 1
      // Predicated region
      $region13: #{upsample_conv_layer.1} parent=11 // pred_check
        %p118 = pneg %p56
      $region14: #{upsample_conv_layer.1} parent=11 // pred_check_branch
        %120 = sbr.rel (%p118) target = $region16
      $region15: #{upsample_conv_layer.1} parent=11 // pred_region
        _
      $region16: #{upsample_conv_layer.1} parent=11 // pred_fallthru
        _
      // Predicated region
      $region17: #{upsample_conv_layer.1} parent=11 // pred_check
        %p121 = pneg %p77
      $region18: #{upsample_conv_layer.1} parent=11 // pred_check_branch
        %123 = sbr.rel (%p121) target = $region20
      $region19: #{upsample_conv_layer.1} parent=11 // pred_region
        _
      $region20: #{upsample_conv_layer.1} parent=11 // pred_fallthru
        _
    $region12: #{upsample_conv_layer.1} parent=5 // pred_fallthru
      _
    %p124 = scmp.lt.s32.totalorder %s9, 2
    // Predicated region
    $region21: #{upsample_conv_layer.1} parent=5 // pred_check
      %p125 = pneg %p124
    $region22: #{upsample_conv_layer.1} parent=5 // pred_check_branch
      %127 = sbr.rel (%p125) target = $region24
    $region23: #{upsample_conv_layer.1} parent=5 // pred_region
      // Predicated region
      $region25: #{upsample_conv_layer.1} parent=23 // pred_check
        %p128 = pneg %p29
      $region26: #{upsample_conv_layer.1} parent=23 // pred_check_branch
        %130 = sbr.rel (%p128) target = $region28
      $region27: #{upsample_conv_layer.1} parent=23 // pred_region
        %p131 = scmp.lt.s32.totalorder %s9, 1
        %s132 = scalar_select %p131, %s9, 1
        %s133 = smul.addr %s132, 10
        %s134 = smul.addr %s133, 4
        %s135 = scalar_lea.vmem %s0, %s134
      $region28: #{upsample_conv_layer.1} parent=23 // pred_fallthru
        _
    $region24: #{upsample_conv_layer.1} parent=5 // pred_fallthru
      _
    %p136 = scmp.le.s32.totalorder 1, %s9
    %p137 = scmp.lt.s32.totalorder %s9, 3
    %p138 = pnand %p136, %p137
    %p139 = pneg %p138
    // Predicated region
    $region29: #{upsample_conv_layer.1} parent=5 // pred_check
      _
    $region30: #{upsample_conv_layer.1} parent=5 // pred_check_branch
      %141 = sbr.rel (%p138) target = $region32
    $region31: #{upsample_conv_layer.1} parent=5 // pred_region
      %s142 = ssub.s32 %s9, 1
      %p143 = scmp.lt.s32.totalorder %s14, 1
      %s144 = scalar_select %p143, %s14, 1
      %s145 = smul.addr %s144, 10
      %s146 = smul.addr %s145, 4
      %s147 = scalar_lea.vmem %s0, %s146
      %p148 = pneg %p35
      %p149 = pneg %p32
      %p150 = pneg %p56
      %p151 = pneg %p53
      %p152 = pneg %p77
      %p153 = pneg %p74
      %p154 = pneg %p103
      %p155 = pneg %p100
      %p156 = scmp.lt.s32.totalorder %s14, 1
      %s157 = scalar_select %p156, %s14, 1
      %s158 = smul.addr %s157, 9
      %s159 = smul.addr %s158, 8
      %s160 = scalar_lea.vmem %s3, %s159
      %p161 = scmp.lt.s32.totalorder %s14, 1
      %s162 = scalar_select %p161, %s14, 1
      %s163 = smul.addr %s162, 10
      %s164 = smul.addr %s163, 4
      %s165 = scalar_lea.vmem %s0, %s164
      %p166 = scmp.lt.s32.totalorder %s14, 1
      %s167 = scalar_select %p166, %s14, 1
      %s168 = smul.addr %s167, 9
      %s169 = smul.addr %s168, 8
      %s170 = scalar_lea.vmem %s3, %s169
      %v171 = vld [vmem:[%s165] sm:$0xff]
      %v172 = vld [vmem:[%s165 + $0x8] sm:$0xff]
      %v173 = vld [vmem:[%s165 + $0x10] sm:$0xff]
      %v174 = vld [vmem:[%s165 + $0x18] sm:$0xff]
      %v175 = vld [vmem:[%s165 + $0x20] sm:$0xf]
      %v176 = vld [vmem:[%s1] sm:$0xff]
      %v177 = vld [vmem:[%s165] sm:$0xff]
      %v178 = vld [vmem:[%s165 + $0x8] sm:$0xff]
      %v179 = vld [vmem:[%s165 + $0x10] sm:$0xff]
      %v180 = vld [vmem:[%s165 + $0x18] sm:$0xff]
      %v181 = vld [vmem:[%s165 + $0x20] sm:$0xff]
      %s182 = scalar_lea.vmem %s1, 8
      %v183 = vld [vmem:[%s182] sm:$0xff]
      %189 = vst [vmem:[#allocation1] ss:$2 sm:$0xff] %v177
      %s190 = scalar_lea.vmem [#allocation1], 16
      %191 = vst [vmem:[%s190] ss:$2 sm:$0xff] %v178
      %s192 = scalar_lea.vmem [#allocation1], 32
      %193 = vst [vmem:[%s192] ss:$2 sm:$0xff] %v179
      %s194 = scalar_lea.vmem [#allocation1], 48
      %195 = vst [vmem:[%s194] ss:$2 sm:$0xff] %v180
      %v196 = vld.sshfl [vmem:[#allocation1] sm:$0xff pattern:$0x75316420]
      %v197 = vld.sshfl [vmem:[#allocation1 + $0x8] sm:$0xff pattern:$0x75316420]
      %v198 = vld.sshfl [vmem:[#allocation1 + $0x10] sm:$0xff pattern:$0x75316420]
      %v199 = vld.sshfl [vmem:[#allocation1 + $0x18] sm:$0xff pattern:$0x75316420]
      %v200 = vld.sshfl [vmem:[#allocation1 + $0x20] sm:$0xff pattern:$0x75316420]
      %v201 = vld.sshfl [vmem:[#allocation1 + $0x28] sm:$0xff pattern:$0x75316420]
      %v202 = vld.sshfl [vmem:[#allocation1 + $0x30] sm:$0xff pattern:$0x75316420]
      %v203 = vld.sshfl [vmem:[#allocation1 + $0x38] sm:$0xff pattern:$0x75316420]
      %204 = vst [vmem:[#allocation1] ss:$2 sm:$0xff] %v181
      %v205 = vld.sshfl [vmem:[#allocation1] sm:$0xff pattern:$0x75316420]
      %v206 = vld.sshfl [vmem:[#allocation1 + $0x8] sm:$0xff pattern:$0x75316420]
      %207 = vrot.lane.b32.xlu0 %v196, 127
      %v208 = vpop.permute.xlu0 %207
      %209 = vrot.lane.b32.xlu0 %v197, 127
      %v210 = vpop.permute.xlu0 %209
      %211 = vrot.lane.b32.xlu0 %v198, 127
      %v212 = vpop.permute.xlu0 %211
      %213 = vrot.lane.b32.xlu0 %v199, 127
      %v214 = vpop.permute.xlu0 %213
      %215 = vrot.lane.b32.xlu0 %v200, 127
      %v216 = vpop.permute.xlu0 %215
      %217 = vrot.lane.b32.xlu0 %v201, 127
      %v218 = vpop.permute.xlu0 %217
      %219 = vrot.lane.b32.xlu0 %v202, 127
      %v220 = vpop.permute.xlu0 %219
      %221 = vrot.lane.b32.xlu0 %v203, 127
      %v222 = vpop.permute.xlu0 %221
      %223 = vrot.lane.b32.xlu0 %v205, 127
      %v224 = vpop.permute.xlu0 %223
      %225 = vrot.lane.b32.xlu0 %v206, 127
      %v226 = vpop.permute.xlu0 %225
      %vm227 = vcmask 1039360
      %v228 = vsel %vm227, %v208, %v210
      %v229 = vsel %vm227, %v210, %v212
      %v230 = vsel %vm227, %v212, %v214
      %v231 = vsel %vm227, %v214, %v216
      %v232 = vsel %vm227, %v216, %v218
      %v233 = vsel %vm227, %v218, %v220
      %v234 = vsel %vm227, %v220, %v222
      %v235 = vsel %vm227, %v222, %v224
      %v236 = vsel %vm227, %v224, %v226
      %vm237 = vcmask 31744
      %v239 = vsel %vm237, %v183, 0
      %vm241 = vcmask 1043456
      %v242 = vsel %vm241, %v228, 0
      %v244 = vsel %vm241, %v229, 0
      %v246 = vsel %vm241, %v230, 0
      %v248 = vsel %vm241, %v231, 0
      %v250 = vsel %vm241, %v232, 0
      %v252 = vsel %vm241, %v233, 0
      %v254 = vsel %vm241, %v234, 0
      %v256 = vsel %vm241, %v235, 0
      %v258 = vsel %vm241, %v236, 0
      %260 = vmatpush.msra.mxu0 0.0
      %261 = vmatpush.msra.mxu0 0.0
      %262 = vmatpush.msra.mxu0 0.0
      %263 = vmatpush.msra.mxu0 0.0
      %264 = vmatpush.msra.mxu0 0.0
      %265 = vmatpush.msra.mxu0 0.0
      %266 = vmatpush.msra.mxu0 0.0
      %267 = vmatpush.msra.mxu0 0.0
      %268 = vmatpush.msra.mxu0 0.0
      %269 = vmatpush.msra.mxu0 0.0
      %270 = vmatpush.msra.mxu0 0.0
      %271 = vmatpush.msra.mxu0 0.0
      %272 = vmatpush.msra.mxu0 0.0
      %273 = vmatpush.msra.mxu0 0.0
      %274 = vmatpush.msra.mxu0 0.0
      %275 = vmatpush.msra.mxu0 %v242
      %276 = vmatmul.f32.gmra.mxu0 %v239
      %v277 = vpop.f32.mrf.mxu0
      %v278 = vadd.f32 0.0, %v277
      %279 = vdwg.mxu0
      %280 = vmatpush.msra.mxu0 0.0
      %281 = vmatpush.msra.mxu0 0.0
      %282 = vmatpush.msra.mxu0 0.0
      %283 = vmatpush.msra.mxu0 0.0
      %284 = vmatpush.msra.mxu0 0.0
      %285 = vmatpush.msra.mxu0 0.0
      %286 = vmatpush.msra.mxu0 0.0
      %287 = vmatpush.msra.mxu0 0.0
      %288 = vmatpush.msra.mxu0 0.0
      %289 = vmatpush.msra.mxu0 0.0
      %290 = vmatpush.msra.mxu0 0.0
      %291 = vmatpush.msra.mxu0 0.0
      %292 = vmatpush.msra.mxu0 0.0
      %293 = vmatpush.msra.mxu0 0.0
      %294 = vmatpush.msra.mxu0 0.0
      %295 = vmatpush.msra.mxu0 %v244
      %296 = vmatmul.f32.gmra.mxu0 %v239
      %v297 = vpop.f32.mrf.mxu0
      %v298 = vadd.f32 0.0, %v297
      %299 = vdwg.mxu0
      %300 = vmatpush.msra.mxu0 0.0
      %301 = vmatpush.msra.mxu0 0.0
      %302 = vmatpush.msra.mxu0 0.0
      %303 = vmatpush.msra.mxu0 0.0
      %304 = vmatpush.msra.mxu0 0.0
      %305 = vmatpush.msra.mxu0 0.0
      %306 = vmatpush.msra.mxu0 0.0
      %307 = vmatpush.msra.mxu0 0.0
      %308 = vmatpush.msra.mxu0 0.0
      %309 = vmatpush.msra.mxu0 0.0
      %310 = vmatpush.msra.mxu0 0.0
      %311 = vmatpush.msra.mxu0 0.0
      %312 = vmatpush.msra.mxu0 0.0
      %313 = vmatpush.msra.mxu0 0.0
      %314 = vmatpush.msra.mxu0 0.0
      %315 = vmatpush.msra.mxu0 %v246
      %316 = vmatmul.f32.gmra.mxu0 %v239
      %v317 = vpop.f32.mrf.mxu0
      %v318 = vadd.f32 0.0, %v317
      %319 = vdwg.mxu0
      %320 = vmatpush.msra.mxu0 0.0
      %321 = vmatpush.msra.mxu0 0.0
      %322 = vmatpush.msra.mxu0 0.0
      %323 = vmatpush.msra.mxu0 0.0
      %324 = vmatpush.msra.mxu0 0.0
      %325 = vmatpush.msra.mxu0 0.0
      %326 = vmatpush.msra.mxu0 0.0
      %327 = vmatpush.msra.mxu0 0.0
      %328 = vmatpush.msra.mxu0 0.0
      %329 = vmatpush.msra.mxu0 0.0
      %330 = vmatpush.msra.mxu0 0.0
      %331 = vmatpush.msra.mxu0 0.0
      %332 = vmatpush.msra.mxu0 0.0
      %333 = vmatpush.msra.mxu0 0.0
      %334 = vmatpush.msra.mxu0 0.0
      %335 = vmatpush.msra.mxu0 %v248
      %336 = vmatmul.f32.gmra.mxu0 %v239
      %v337 = vpop.f32.mrf.mxu0
      %v338 = vadd.f32 0.0, %v337
      %339 = vdwg.mxu0
      %340 = vmatpush.msra.mxu0 0.0
      %341 = vmatpush.msra.mxu0 0.0
      %342 = vmatpush.msra.mxu0 0.0
      %343 = vmatpush.msra.mxu0 0.0
      %344 = vmatpush.msra.mxu0 0.0
      %345 = vmatpush.msra.mxu0 0.0
      %346 = vmatpush.msra.mxu0 0.0
      %347 = vmatpush.msra.mxu0 0.0
      %348 = vmatpush.msra.mxu0 0.0
      %349 = vmatpush.msra.mxu0 0.0
      %350 = vmatpush.msra.mxu0 0.0
      %351 = vmatpush.msra.mxu0 0.0
      %352 = vmatpush.msra.mxu0 0.0
      %353 = vmatpush.msra.mxu0 0.0
      %354 = vmatpush.msra.mxu0 0.0
      %355 = vmatpush.msra.mxu0 %v250
      %356 = vmatmul.f32.gmra.mxu0 %v239
      %v357 = vpop.f32.mrf.mxu0
      %v358 = vadd.f32 0.0, %v357
      %359 = vdwg.mxu0
      %360 = vmatpush.msra.mxu0 0.0
      %361 = vmatpush.msra.mxu0 0.0
      %362 = vmatpush.msra.mxu0 0.0
      %363 = vmatpush.msra.mxu0 0.0
      %364 = vmatpush.msra.mxu0 0.0
      %365 = vmatpush.msra.mxu0 0.0
      %366 = vmatpush.msra.mxu0 0.0
      %367 = vmatpush.msra.mxu0 0.0
      %368 = vmatpush.msra.mxu0 0.0
      %369 = vmatpush.msra.mxu0 0.0
      %370 = vmatpush.msra.mxu0 0.0
      %371 = vmatpush.msra.mxu0 0.0
      %372 = vmatpush.msra.mxu0 0.0
      %373 = vmatpush.msra.mxu0 0.0
      %374 = vmatpush.msra.mxu0 0.0
      %375 = vmatpush.msra.mxu0 %v252
      %376 = vmatmul.f32.gmra.mxu0 %v239
      %v377 = vpop.f32.mrf.mxu0
      %v378 = vadd.f32 0.0, %v377
      %379 = vdwg.mxu0
      %380 = vmatpush.msra.mxu0 0.0
      %381 = vmatpush.msra.mxu0 0.0
      %382 = vmatpush.msra.mxu0 0.0
      %383 = vmatpush.msra.mxu0 0.0
      %384 = vmatpush.msra.mxu0 0.0
      %385 = vmatpush.msra.mxu0 0.0
      %386 = vmatpush.msra.mxu0 0.0
      %387 = vmatpush.msra.mxu0 0.0
      %388 = vmatpush.msra.mxu0 0.0
      %389 = vmatpush.msra.mxu0 0.0
      %390 = vmatpush.msra.mxu0 0.0
      %391 = vmatpush.msra.mxu0 0.0
      %392 = vmatpush.msra.mxu0 0.0
      %393 = vmatpush.msra.mxu0 0.0
      %394 = vmatpush.msra.mxu0 0.0
      %395 = vmatpush.msra.mxu0 %v254
      %396 = vmatmul.f32.gmra.mxu0 %v239
      %v397 = vpop.f32.mrf.mxu0
      %v398 = vadd.f32 0.0, %v397
      %399 = vdwg.mxu0
      %400 = vmatpush.msra.mxu0 0.0
      %401 = vmatpush.msra.mxu0 0.0
      %402 = vmatpush.msra.mxu0 0.0
      %403 = vmatpush.msra.mxu0 0.0
      %404 = vmatpush.msra.mxu0 0.0
      %405 = vmatpush.msra.mxu0 0.0
      %406 = vmatpush.msra.mxu0 0.0
      %407 = vmatpush.msra.mxu0 0.0
      %408 = vmatpush.msra.mxu0 0.0
      %409 = vmatpush.msra.mxu0 0.0
      %410 = vmatpush.msra.mxu0 0.0
      %411 = vmatpush.msra.mxu0 0.0
      %412 = vmatpush.msra.mxu0 0.0
      %413 = vmatpush.msra.mxu0 0.0
      %414 = vmatpush.msra.mxu0 0.0
      %415 = vmatpush.msra.mxu0 %v256
      %416 = vmatmul.f32.gmra.mxu0 %v239
      %v417 = vpop.f32.mrf.mxu0
      %v418 = vadd.f32 0.0, %v417
      %419 = vdwg.mxu0
      %420 = vmatpush.msra.mxu0 0.0
      %421 = vmatpush.msra.mxu0 0.0
      %422 = vmatpush.msra.mxu0 0.0
      %423 = vmatpush.msra.mxu0 0.0
      %424 = vmatpush.msra.mxu0 0.0
      %425 = vmatpush.msra.mxu0 0.0
      %426 = vmatpush.msra.mxu0 0.0
      %427 = vmatpush.msra.mxu0 0.0
      %428 = vmatpush.msra.mxu0 0.0
      %429 = vmatpush.msra.mxu0 0.0
      %430 = vmatpush.msra.mxu0 0.0
      %431 = vmatpush.msra.mxu0 0.0
      %432 = vmatpush.msra.mxu0 0.0
      %433 = vmatpush.msra.mxu0 0.0
      %434 = vmatpush.msra.mxu0 0.0
      %435 = vmatpush.msra.mxu0 %v258
      %436 = vmatmul.f32.gmra.mxu0 %v239
      %v437 = vpop.f32.mrf.mxu0
      %v438 = vadd.f32 0.0, %v437
      %439 = vdwg.mxu0
      %445 = vst [vmem:[#allocation1] ss:$2 sm:$0xff] %v171
      %s446 = scalar_lea.vmem [#allocation1], 16
      %447 = vst [vmem:[%s446] ss:$2 sm:$0xff] %v172
      %s448 = scalar_lea.vmem [#allocation1], 32
      %449 = vst [vmem:[%s448] ss:$2 sm:$0xff] %v173
      %s450 = scalar_lea.vmem [#allocation1], 48
      %451 = vst [vmem:[%s450] ss:$2 sm:$0xff] %v174
      %v452 = vld.sshfl [vmem:[#allocation1] sm:$0xff pattern:$0x75316420]
      %v453 = vld.sshfl [vmem:[#allocation1 + $0x8] sm:$0xff pattern:$0x75316420]
      %v454 = vld.sshfl [vmem:[#allocation1 + $0x10] sm:$0xff pattern:$0x75316420]
      %v455 = vld.sshfl [vmem:[#allocation1 + $0x18] sm:$0xff pattern:$0x75316420]
      %v456 = vld.sshfl [vmem:[#allocation1 + $0x20] sm:$0xff pattern:$0x75316420]
      %v457 = vld.sshfl [vmem:[#allocation1 + $0x28] sm:$0xff pattern:$0x75316420]
      %v458 = vld.sshfl [vmem:[#allocation1 + $0x30] sm:$0xff pattern:$0x75316420]
      %v459 = vld.sshfl [vmem:[#allocation1 + $0x38] sm:$0xff pattern:$0x75316420]
      %460 = vst [vmem:[#allocation1] ss:$2 sm:$0xff] %v175
      %v461 = vld.sshfl [vmem:[#allocation1] sm:$0xff pattern:$0x75316420]
      %v463 = vsel %vm237, %v176, 0
      %v465 = vsel %vm241, %v452, 0
      %v467 = vsel %vm241, %v453, 0
      %v469 = vsel %vm241, %v454, 0
      %v471 = vsel %vm241, %v455, 0
      %v473 = vsel %vm241, %v456, 0
      %v475 = vsel %vm241, %v457, 0
      %v477 = vsel %vm241, %v458, 0
      %v479 = vsel %vm241, %v459, 0
      %v481 = vsel %vm241, %v461, 0
      %483 = vmatpush.msra.mxu0 0.0
      %484 = vmatpush.msra.mxu0 0.0
      %485 = vmatpush.msra.mxu0 0.0
      %486 = vmatpush.msra.mxu0 0.0
      %487 = vmatpush.msra.mxu0 0.0
      %488 = vmatpush.msra.mxu0 0.0
      %489 = vmatpush.msra.mxu0 0.0
      %490 = vmatpush.msra.mxu0 0.0
      %491 = vmatpush.msra.mxu0 0.0
      %492 = vmatpush.msra.mxu0 0.0
      %493 = vmatpush.msra.mxu0 0.0
      %494 = vmatpush.msra.mxu0 0.0
      %495 = vmatpush.msra.mxu0 0.0
      %496 = vmatpush.msra.mxu0 0.0
      %497 = vmatpush.msra.mxu0 0.0
      %498 = vmatpush.msra.mxu0 %v465
      %499 = vmatmul.f32.gmra.mxu0 %v463
      %v500 = vpop.f32.mrf.mxu0
      %v501 = vadd.f32 %v278, %v500
      %502 = vdwg.mxu0
      %503 = vmatpush.msra.mxu0 0.0
      %504 = vmatpush.msra.mxu0 0.0
      %505 = vmatpush.msra.mxu0 0.0
      %506 = vmatpush.msra.mxu0 0.0
      %507 = vmatpush.msra.mxu0 0.0
      %508 = vmatpush.msra.mxu0 0.0
      %509 = vmatpush.msra.mxu0 0.0
      %510 = vmatpush.msra.mxu0 0.0
      %511 = vmatpush.msra.mxu0 0.0
      %512 = vmatpush.msra.mxu0 0.0
      %513 = vmatpush.msra.mxu0 0.0
      %514 = vmatpush.msra.mxu0 0.0
      %515 = vmatpush.msra.mxu0 0.0
      %516 = vmatpush.msra.mxu0 0.0
      %517 = vmatpush.msra.mxu0 0.0
      %518 = vmatpush.msra.mxu0 %v467
      %519 = vmatmul.f32.gmra.mxu0 %v463
      %v520 = vpop.f32.mrf.mxu0
      %v521 = vadd.f32 %v298, %v520
      %522 = vdwg.mxu0
      %523 = vmatpush.msra.mxu0 0.0
      %524 = vmatpush.msra.mxu0 0.0
      %525 = vmatpush.msra.mxu0 0.0
      %526 = vmatpush.msra.mxu0 0.0
      %527 = vmatpush.msra.mxu0 0.0
      %528 = vmatpush.msra.mxu0 0.0
      %529 = vmatpush.msra.mxu0 0.0
      %530 = vmatpush.msra.mxu0 0.0
      %531 = vmatpush.msra.mxu0 0.0
      %532 = vmatpush.msra.mxu0 0.0
      %533 = vmatpush.msra.mxu0 0.0
      %534 = vmatpush.msra.mxu0 0.0
      %535 = vmatpush.msra.mxu0 0.0
      %536 = vmatpush.msra.mxu0 0.0
      %537 = vmatpush.msra.mxu0 0.0
      %538 = vmatpush.msra.mxu0 %v469
      %539 = vmatmul.f32.gmra.mxu0 %v463
      %v540 = vpop.f32.mrf.mxu0
      %v541 = vadd.f32 %v318, %v540
      %542 = vdwg.mxu0
      %543 = vmatpush.msra.mxu0 0.0
      %544 = vmatpush.msra.mxu0 0.0
      %545 = vmatpush.msra.mxu0 0.0
      %546 = vmatpush.msra.mxu0 0.0
      %547 = vmatpush.msra.mxu0 0.0
      %548 = vmatpush.msra.mxu0 0.0
      %549 = vmatpush.msra.mxu0 0.0
      %550 = vmatpush.msra.mxu0 0.0
      %551 = vmatpush.msra.mxu0 0.0
      %552 = vmatpush.msra.mxu0 0.0
      %553 = vmatpush.msra.mxu0 0.0
      %554 = vmatpush.msra.mxu0 0.0
      %555 = vmatpush.msra.mxu0 0.0
      %556 = vmatpush.msra.mxu0 0.0
      %557 = vmatpush.msra.mxu0 0.0
      %558 = vmatpush.msra.mxu0 %v471
      %559 = vmatmul.f32.gmra.mxu0 %v463
      %v560 = vpop.f32.mrf.mxu0
      %v561 = vadd.f32 %v338, %v560
      %562 = vdwg.mxu0
      %563 = vmatpush.msra.mxu0 0.0
      %564 = vmatpush.msra.mxu0 0.0
      %565 = vmatpush.msra.mxu0 0.0
      %566 = vmatpush.msra.mxu0 0.0
      %567 = vmatpush.msra.mxu0 0.0
      %568 = vmatpush.msra.mxu0 0.0
      %569 = vmatpush.msra.mxu0 0.0
      %570 = vmatpush.msra.mxu0 0.0
      %571 = vmatpush.msra.mxu0 0.0
      %572 = vmatpush.msra.mxu0 0.0
      %573 = vmatpush.msra.mxu0 0.0
      %574 = vmatpush.msra.mxu0 0.0
      %575 = vmatpush.msra.mxu0 0.0
      %576 = vmatpush.msra.mxu0 0.0
      %577 = vmatpush.msra.mxu0 0.0
      %578 = vmatpush.msra.mxu0 %v473
      %579 = vmatmul.f32.gmra.mxu0 %v463
      %v580 = vpop.f32.mrf.mxu0
      %v581 = vadd.f32 %v358, %v580
      %582 = vdwg.mxu0
      %583 = vmatpush.msra.mxu0 0.0
      %584 = vmatpush.msra.mxu0 0.0
      %585 = vmatpush.msra.mxu0 0.0
      %586 = vmatpush.msra.mxu0 0.0
      %587 = vmatpush.msra.mxu0 0.0
      %588 = vmatpush.msra.mxu0 0.0
      %589 = vmatpush.msra.mxu0 0.0
      %590 = vmatpush.msra.mxu0 0.0
      %591 = vmatpush.msra.mxu0 0.0
      %592 = vmatpush.msra.mxu0 0.0
      %593 = vmatpush.msra.mxu0 0.0
      %594 = vmatpush.msra.mxu0 0.0
      %595 = vmatpush.msra.mxu0 0.0
      %596 = vmatpush.msra.mxu0 0.0
      %597 = vmatpush.msra.mxu0 0.0
      %598 = vmatpush.msra.mxu0 %v475
      %599 = vmatmul.f32.gmra.mxu0 %v463
      %v600 = vpop.f32.mrf.mxu0
      %v601 = vadd.f32 %v378, %v600
      %602 = vdwg.mxu0
      %603 = vmatpush.msra.mxu0 0.0
      %604 = vmatpush.msra.mxu0 0.0
      %605 = vmatpush.msra.mxu0 0.0
      %606 = vmatpush.msra.mxu0 0.0
      %607 = vmatpush.msra.mxu0 0.0
      %608 = vmatpush.msra.mxu0 0.0
      %609 = vmatpush.msra.mxu0 0.0
      %610 = vmatpush.msra.mxu0 0.0
      %611 = vmatpush.msra.mxu0 0.0
      %612 = vmatpush.msra.mxu0 0.0
      %613 = vmatpush.msra.mxu0 0.0
      %614 = vmatpush.msra.mxu0 0.0
      %615 = vmatpush.msra.mxu0 0.0
      %616 = vmatpush.msra.mxu0 0.0
      %617 = vmatpush.msra.mxu0 0.0
      %618 = vmatpush.msra.mxu0 %v477
      %619 = vmatmul.f32.gmra.mxu0 %v463
      %v620 = vpop.f32.mrf.mxu0
      %v621 = vadd.f32 %v398, %v620
      %622 = vdwg.mxu0
      %623 = vmatpush.msra.mxu0 0.0
      %624 = vmatpush.msra.mxu0 0.0
      %625 = vmatpush.msra.mxu0 0.0
      %626 = vmatpush.msra.mxu0 0.0
      %627 = vmatpush.msra.mxu0 0.0
      %628 = vmatpush.msra.mxu0 0.0
      %629 = vmatpush.msra.mxu0 0.0
      %630 = vmatpush.msra.mxu0 0.0
      %631 = vmatpush.msra.mxu0 0.0
      %632 = vmatpush.msra.mxu0 0.0
      %633 = vmatpush.msra.mxu0 0.0
      %634 = vmatpush.msra.mxu0 0.0
      %635 = vmatpush.msra.mxu0 0.0
      %636 = vmatpush.msra.mxu0 0.0
      %637 = vmatpush.msra.mxu0 0.0
      %638 = vmatpush.msra.mxu0 %v479
      %639 = vmatmul.f32.gmra.mxu0 %v463
      %v640 = vpop.f32.mrf.mxu0
      %v641 = vadd.f32 %v418, %v640
      %642 = vdwg.mxu0
      %643 = vmatpush.msra.mxu0 0.0
      %644 = vmatpush.msra.mxu0 0.0
      %645 = vmatpush.msra.mxu0 0.0
      %646 = vmatpush.msra.mxu0 0.0
      %647 = vmatpush.msra.mxu0 0.0
      %648 = vmatpush.msra.mxu0 0.0
      %649 = vmatpush.msra.mxu0 0.0
      %650 = vmatpush.msra.mxu0 0.0
      %651 = vmatpush.msra.mxu0 0.0
      %652 = vmatpush.msra.mxu0 0.0
      %653 = vmatpush.msra.mxu0 0.0
      %654 = vmatpush.msra.mxu0 0.0
      %655 = vmatpush.msra.mxu0 0.0
      %656 = vmatpush.msra.mxu0 0.0
      %657 = vmatpush.msra.mxu0 0.0
      %658 = vmatpush.msra.mxu0 %v481
      %659 = vmatmul.f32.gmra.mxu0 %v463
      %v660 = vpop.f32.mrf.mxu0
      %v661 = vadd.f32 %v438, %v660
      %662 = vdwg.mxu0
      %v663 = vld [vmem:[%s165] sm:$0xff]
      %v664 = vld [vmem:[%s165 + $0x8] sm:$0xff]
      %v665 = vld [vmem:[%s165 + $0x10] sm:$0xff]
      %v666 = vld [vmem:[%s165 + $0x18] sm:$0xff]
      %v667 = vld [vmem:[%s165 + $0x20] sm:$0xff]
      %s668 = scalar_lea.vmem %s1, 16
      %v669 = vld [vmem:[%s668] sm:$0xff]
      %675 = vst [vmem:[#allocation1] ss:$2 sm:$0xff] %v663
      %s676 = scalar_lea.vmem [#allocation1], 16
      %677 = vst [vmem:[%s676] ss:$2 sm:$0xff] %v664
      %s678 = scalar_lea.vmem [#allocation1], 32
      %679 = vst [vmem:[%s678] ss:$2 sm:$0xff] %v665
      %s680 = scalar_lea.vmem [#allocation1], 48
      %681 = vst [vmem:[%s680] ss:$2 sm:$0xff] %v666
      %v682 = vld.sshfl [vmem:[#allocation1] sm:$0xff pattern:$0x75316420]
      %v683 = vld.sshfl [vmem:[#allocation1 + $0x8] sm:$0xff pattern:$0x75316420]
      %v684 = vld.sshfl [vmem:[#allocation1 + $0x10] sm:$0xff pattern:$0x75316420]
      %v685 = vld.sshfl [vmem:[#allocation1 + $0x18] sm:$0xff pattern:$0x75316420]
      %v686 = vld.sshfl [vmem:[#allocation1 + $0x20] sm:$0xff pattern:$0x75316420]
      %v687 = vld.sshfl [vmem:[#allocation1 + $0x28] sm:$0xff pattern:$0x75316420]
      %v688 = vld.sshfl [vmem:[#allocation1 + $0x30] sm:$0xff pattern:$0x75316420]
      %v689 = vld.sshfl [vmem:[#allocation1 + $0x38] sm:$0xff pattern:$0x75316420]
      %690 = vst [vmem:[#allocation1] ss:$2 sm:$0xff] %v667
      %v691 = vld.sshfl [vmem:[#allocation1] sm:$0xff pattern:$0x75316420]
      %v692 = vld.sshfl [vmem:[#allocation1 + $0x8] sm:$0xff pattern:$0x75316420]
      %693 = vrot.lane.b32.xlu0 %v682, 126
      %v694 = vpop.permute.xlu0 %693
      %695 = vrot.lane.b32.xlu0 %v683, 126
      %v696 = vpop.permute.xlu0 %695
      %697 = vrot.lane.b32.xlu0 %v684, 126
      %v698 = vpop.permute.xlu0 %697
      %699 = vrot.lane.b32.xlu0 %v685, 126
      %v700 = vpop.permute.xlu0 %699
      %701 = vrot.lane.b32.xlu0 %v686, 126
      %v702 = vpop.permute.xlu0 %701
      %703 = vrot.lane.b32.xlu0 %v687, 126
      %v704 = vpop.permute.xlu0 %703
      %705 = vrot.lane.b32.xlu0 %v688, 126
      %v706 = vpop.permute.xlu0 %705
      %707 = vrot.lane.b32.xlu0 %v689, 126
      %v708 = vpop.permute.xlu0 %707
      %709 = vrot.lane.b32.xlu0 %v691, 126
      %v710 = vpop.permute.xlu0 %709
      %711 = vrot.lane.b32.xlu0 %v692, 126
      %v712 = vpop.permute.xlu0 %711
      %vm713 = vcmask 1031168
      %v714 = vsel %vm713, %v694, %v696
      %v715 = vsel %vm713, %v696, %v698
      %v716 = vsel %vm713, %v698, %v700
      %v717 = vsel %vm713, %v700, %v702
      %v718 = vsel %vm713, %v702, %v704
      %v719 = vsel %vm713, %v704, %v706
      %v720 = vsel %vm713, %v706, %v708
      %v721 = vsel %vm713, %v708, %v710
      %v722 = vsel %vm713, %v710, %v712
      %v724 = vsel %vm237, %v669, 0
      %v726 = vsel %vm241, %v714, 0
      %v728 = vsel %vm241, %v715, 0
      %v730 = vsel %vm241, %v716, 0
      %v732 = vsel %vm241, %v717, 0
      %v734 = vsel %vm241, %v718, 0
      %v736 = vsel %vm241, %v719, 0
      %v738 = vsel %vm241, %v720, 0
      %v740 = vsel %vm241, %v721, 0
      %v742 = vsel %vm241, %v722, 0
      %744 = vmatpush.msra.mxu0 0.0
      %745 = vmatpush.msra.mxu0 0.0
      %746 = vmatpush.msra.mxu0 0.0
      %747 = vmatpush.msra.mxu0 0.0
      %748 = vmatpush.msra.mxu0 0.0
      %749 = vmatpush.msra.mxu0 0.0
      %750 = vmatpush.msra.mxu0 0.0
      %751 = vmatpush.msra.mxu0 0.0
      %752 = vmatpush.msra.mxu0 0.0
      %753 = vmatpush.msra.mxu0 0.0
      %754 = vmatpush.msra.mxu0 0.0
      %755 = vmatpush.msra.mxu0 0.0
      %756 = vmatpush.msra.mxu0 0.0
      %757 = vmatpush.msra.mxu0 0.0
      %758 = vmatpush.msra.mxu0 0.0
      %759 = vmatpush.msra.mxu0 %v726
      %760 = vmatmul.f32.gmra.mxu0 %v724
      %v761 = vpop.f32.mrf.mxu0
      %v762 = vadd.f32 0.0, %v761
      %763 = vdwg.mxu0
      %764 = vmatpush.msra.mxu0 0.0
      %765 = vmatpush.msra.mxu0 0.0
      %766 = vmatpush.msra.mxu0 0.0
      %767 = vmatpush.msra.mxu0 0.0
      %768 = vmatpush.msra.mxu0 0.0
      %769 = vmatpush.msra.mxu0 0.0
      %770 = vmatpush.msra.mxu0 0.0
      %771 = vmatpush.msra.mxu0 0.0
      %772 = vmatpush.msra.mxu0 0.0
      %773 = vmatpush.msra.mxu0 0.0
      %774 = vmatpush.msra.mxu0 0.0
      %775 = vmatpush.msra.mxu0 0.0
      %776 = vmatpush.msra.mxu0 0.0
      %777 = vmatpush.msra.mxu0 0.0
      %778 = vmatpush.msra.mxu0 0.0
      %779 = vmatpush.msra.mxu0 %v728
      %780 = vmatmul.f32.gmra.mxu0 %v724
      %v781 = vpop.f32.mrf.mxu0
      %v782 = vadd.f32 0.0, %v781
      %783 = vdwg.mxu0
      %784 = vmatpush.msra.mxu0 0.0
      %785 = vmatpush.msra.mxu0 0.0
      %786 = vmatpush.msra.mxu0 0.0
      %787 = vmatpush.msra.mxu0 0.0
      %788 = vmatpush.msra.mxu0 0.0
      %789 = vmatpush.msra.mxu0 0.0
      %790 = vmatpush.msra.mxu0 0.0
      %791 = vmatpush.msra.mxu0 0.0
      %792 = vmatpush.msra.mxu0 0.0
      %793 = vmatpush.msra.mxu0 0.0
      %794 = vmatpush.msra.mxu0 0.0
      %795 = vmatpush.msra.mxu0 0.0
      %796 = vmatpush.msra.mxu0 0.0
      %797 = vmatpush.msra.mxu0 0.0
      %798 = vmatpush.msra.mxu0 0.0
      %799 = vmatpush.msra.mxu0 %v730
      %800 = vmatmul.f32.gmra.mxu0 %v724
      %v801 = vpop.f32.mrf.mxu0
      %v802 = vadd.f32 0.0, %v801
      %803 = vdwg.mxu0
      %804 = vmatpush.msra.mxu0 0.0
      %805 = vmatpush.msra.mxu0 0.0
      %806 = vmatpush.msra.mxu0 0.0
      %807 = vmatpush.msra.mxu0 0.0
      %808 = vmatpush.msra.mxu0 0.0
      %809 = vmatpush.msra.mxu0 0.0
      %810 = vmatpush.msra.mxu0 0.0
      %811 = vmatpush.msra.mxu0 0.0
      %812 = vmatpush.msra.mxu0 0.0
      %813 = vmatpush.msra.mxu0 0.0
      %814 = vmatpush.msra.mxu0 0.0
      %815 = vmatpush.msra.mxu0 0.0
      %816 = vmatpush.msra.mxu0 0.0
      %817 = vmatpush.msra.mxu0 0.0
      %818 = vmatpush.msra.mxu0 0.0
      %819 = vmatpush.msra.mxu0 %v732
      %820 = vmatmul.f32.gmra.mxu0 %v724
      %v821 = vpop.f32.mrf.mxu0
      %v822 = vadd.f32 0.0, %v821
      %823 = vdwg.mxu0
      %824 = vmatpush.msra.mxu0 0.0
      %825 = vmatpush.msra.mxu0 0.0
      %826 = vmatpush.msra.mxu0 0.0
      %827 = vmatpush.msra.mxu0 0.0
      %828 = vmatpush.msra.mxu0 0.0
      %829 = vmatpush.msra.mxu0 0.0
      %830 = vmatpush.msra.mxu0 0.0
      %831 = vmatpush.msra.mxu0 0.0
      %832 = vmatpush.msra.mxu0 0.0
      %833 = vmatpush.msra.mxu0 0.0
      %834 = vmatpush.msra.mxu0 0.0
      %835 = vmatpush.msra.mxu0 0.0
      %836 = vmatpush.msra.mxu0 0.0
      %837 = vmatpush.msra.mxu0 0.0
      %838 = vmatpush.msra.mxu0 0.0
      %839 = vmatpush.msra.mxu0 %v734
      %840 = vmatmul.f32.gmra.mxu0 %v724
      %v841 = vpop.f32.mrf.mxu0
      %v842 = vadd.f32 0.0, %v841
      %843 = vdwg.mxu0
      %844 = vmatpush.msra.mxu0 0.0
      %845 = vmatpush.msra.mxu0 0.0
      %846 = vmatpush.msra.mxu0 0.0
      %847 = vmatpush.msra.mxu0 0.0
      %848 = vmatpush.msra.mxu0 0.0
      %849 = vmatpush.msra.mxu0 0.0
      %850 = vmatpush.msra.mxu0 0.0
      %851 = vmatpush.msra.mxu0 0.0
      %852 = vmatpush.msra.mxu0 0.0
      %853 = vmatpush.msra.mxu0 0.0
      %854 = vmatpush.msra.mxu0 0.0
      %855 = vmatpush.msra.mxu0 0.0
      %856 = vmatpush.msra.mxu0 0.0
      %857 = vmatpush.msra.mxu0 0.0
      %858 = vmatpush.msra.mxu0 0.0
      %859 = vmatpush.msra.mxu0 %v736
      %860 = vmatmul.f32.gmra.mxu0 %v724
      %v861 = vpop.f32.mrf.mxu0
      %v862 = vadd.f32 0.0, %v861
      %863 = vdwg.mxu0
      %864 = vmatpush.msra.mxu0 0.0
      %865 = vmatpush.msra.mxu0 0.0
      %866 = vmatpush.msra.mxu0 0.0
      %867 = vmatpush.msra.mxu0 0.0
      %868 = vmatpush.msra.mxu0 0.0
      %869 = vmatpush.msra.mxu0 0.0
      %870 = vmatpush.msra.mxu0 0.0
      %871 = vmatpush.msra.mxu0 0.0
      %872 = vmatpush.msra.mxu0 0.0
      %873 = vmatpush.msra.mxu0 0.0
      %874 = vmatpush.msra.mxu0 0.0
      %875 = vmatpush.msra.mxu0 0.0
      %876 = vmatpush.msra.mxu0 0.0
      %877 = vmatpush.msra.mxu0 0.0
      %878 = vmatpush.msra.mxu0 0.0
      %879 = vmatpush.msra.mxu0 %v738
      %880 = vmatmul.f32.gmra.mxu0 %v724
      %v881 = vpop.f32.mrf.mxu0
      %v882 = vadd.f32 0.0, %v881
      %883 = vdwg.mxu0
      %884 = vmatpush.msra.mxu0 0.0
      %885 = vmatpush.msra.mxu0 0.0
      %886 = vmatpush.msra.mxu0 0.0
      %887 = vmatpush.msra.mxu0 0.0
      %888 = vmatpush.msra.mxu0 0.0
      %889 = vmatpush.msra.mxu0 0.0
      %890 = vmatpush.msra.mxu0 0.0
      %891 = vmatpush.msra.mxu0 0.0
      %892 = vmatpush.msra.mxu0 0.0
      %893 = vmatpush.msra.mxu0 0.0
      %894 = vmatpush.msra.mxu0 0.0
      %895 = vmatpush.msra.mxu0 0.0
      %896 = vmatpush.msra.mxu0 0.0
      %897 = vmatpush.msra.mxu0 0.0
      %898 = vmatpush.msra.mxu0 0.0
      %899 = vmatpush.msra.mxu0 %v740
      %900 = vmatmul.f32.gmra.mxu0 %v724
      %v901 = vpop.f32.mrf.mxu0
      %v902 = vadd.f32 0.0, %v901
      %903 = vdwg.mxu0
      %904 = vmatpush.msra.mxu0 0.0
      %905 = vmatpush.msra.mxu0 0.0
      %906 = vmatpush.msra.mxu0 0.0
      %907 = vmatpush.msra.mxu0 0.0
      %908 = vmatpush.msra.mxu0 0.0
      %909 = vmatpush.msra.mxu0 0.0
      %910 = vmatpush.msra.mxu0 0.0
      %911 = vmatpush.msra.mxu0 0.0
      %912 = vmatpush.msra.mxu0 0.0
      %913 = vmatpush.msra.mxu0 0.0
      %914 = vmatpush.msra.mxu0 0.0
      %915 = vmatpush.msra.mxu0 0.0
      %916 = vmatpush.msra.mxu0 0.0
      %917 = vmatpush.msra.mxu0 0.0
      %918 = vmatpush.msra.mxu0 0.0
      %919 = vmatpush.msra.mxu0 %v742
      %920 = vmatmul.f32.gmra.mxu0 %v724
      %v921 = vpop.f32.mrf.mxu0
      %v922 = vadd.f32 0.0, %v921
      %923 = vdwg.mxu0
      %v924 = vadd.f32 %v501, %v762
      %v925 = vadd.f32 %v521, %v782
      %v926 = vadd.f32 %v541, %v802
      %v927 = vadd.f32 %v561, %v822
      %v928 = vadd.f32 %v581, %v842
      %v929 = vadd.f32 %v601, %v862
      %v930 = vadd.f32 %v621, %v882
      %v931 = vadd.f32 %v641, %v902
      %v932 = vadd.f32 %v661, %v922
      %v933 = vld [vmem:[%s165] sm:$0xff]
      %v934 = vld [vmem:[%s165 + $0x8] sm:$0xff]
      %v935 = vld [vmem:[%s165 + $0x10] sm:$0xff]
      %v936 = vld [vmem:[%s165 + $0x18] sm:$0xff]
      %v937 = vld [vmem:[%s165 + $0x20] sm:$0xff]
      %s938 = scalar_lea.vmem %s1, 24
      %v939 = vld [vmem:[%s938] sm:$0xff]
      %945 = vst [vmem:[#allocation1] ss:$2 sm:$0xff] %v933
      %s946 = scalar_lea.vmem [#allocation1], 16
      %947 = vst [vmem:[%s946] ss:$2 sm:$0xff] %v934
      %s948 = scalar_lea.vmem [#allocation1], 32
      %949 = vst [vmem:[%s948] ss:$2 sm:$0xff] %v935
      %s950 = scalar_lea.vmem [#allocation1], 48
      %951 = vst [vmem:[%s950] ss:$2 sm:$0xff] %v936
      %v952 = vld.sshfl [vmem:[#allocation1] sm:$0xff pattern:$0x75316420]
      %v953 = vld.sshfl [vmem:[#allocation1 + $0x8] sm:$0xff pattern:$0x75316420]
      %v954 = vld.sshfl [vmem:[#allocation1 + $0x10] sm:$0xff pattern:$0x75316420]
      %v955 = vld.sshfl [vmem:[#allocation1 + $0x18] sm:$0xff pattern:$0x75316420]
      %v956 = vld.sshfl [vmem:[#allocation1 + $0x20] sm:$0xff pattern:$0x75316420]
      %v957 = vld.sshfl [vmem:[#allocation1 + $0x28] sm:$0xff pattern:$0x75316420]
      %v958 = vld.sshfl [vmem:[#allocation1 + $0x30] sm:$0xff pattern:$0x75316420]
      %v959 = vld.sshfl [vmem:[#allocation1 + $0x38] sm:$0xff pattern:$0x75316420]
      %960 = vst [vmem:[#allocation1] ss:$2 sm:$0xff] %v937
      %v961 = vld.sshfl [vmem:[#allocation1] sm:$0xff pattern:$0x75316420]
      %v962 = vld.sshfl [vmem:[#allocation1 + $0x8] sm:$0xff pattern:$0x75316420]
      %963 = vrot.lane.b32.xlu0 %v952, 94
      %v964 = vpop.permute.xlu0 %963
      %965 = vrot.lane.b32.xlu0 %v953, 94
      %v966 = vpop.permute.xlu0 %965
      %967 = vrot.lane.b32.xlu0 %v954, 94
      %v968 = vpop.permute.xlu0 %967
      %969 = vrot.lane.b32.xlu0 %v955, 94
      %v970 = vpop.permute.xlu0 %969
      %971 = vrot.lane.b32.xlu0 %v956, 94
      %v972 = vpop.permute.xlu0 %971
      %973 = vrot.lane.b32.xlu0 %v957, 94
      %v974 = vpop.permute.xlu0 %973
      %975 = vrot.lane.b32.xlu0 %v958, 94
      %v976 = vpop.permute.xlu0 %975
      %977 = vrot.lane.b32.xlu0 %v959, 94
      %v978 = vpop.permute.xlu0 %977
      %979 = vrot.lane.b32.xlu0 %v961, 94
      %v980 = vpop.permute.xlu0 %979
      %981 = vrot.lane.b32.xlu0 %v962, 94
      %v982 = vpop.permute.xlu0 %981
      %vm983 = vcmask 769024
      %v984 = vsel %vm983, %v964, %v966
      %v985 = vsel %vm983, %v966, %v968
      %v986 = vsel %vm983, %v968, %v970
      %v987 = vsel %vm983, %v970, %v972
      %v988 = vsel %vm983, %v972, %v974
      %v989 = vsel %vm983, %v974, %v976
      %v990 = vsel %vm983, %v976, %v978
      %v991 = vsel %vm983, %v978, %v980
      %v992 = vsel %vm983, %v980, %v982
      %v994 = vsel %vm237, %v939, 0
      %v996 = vsel %vm241, %v984, 0
      %v998 = vsel %vm241, %v985, 0
      %v1000 = vsel %vm241, %v986, 0
      %v1002 = vsel %vm241, %v987, 0
      %v1004 = vsel %vm241, %v988, 0
      %v1006 = vsel %vm241, %v989, 0
      %v1008 = vsel %vm241, %v990, 0
      %v1010 = vsel %vm241, %v991, 0
      %v1012 = vsel %vm241, %v992, 0
      %1014 = vmatpush.msra.mxu0 0.0
      %1015 = vmatpush.msra.mxu0 0.0
      %1016 = vmatpush.msra.mxu0 0.0
      %1017 = vmatpush.msra.mxu0 0.0
      %1018 = vmatpush.msra.mxu0 0.0
      %1019 = vmatpush.msra.mxu0 0.0
      %1020 = vmatpush.msra.mxu0 0.0
      %1021 = vmatpush.msra.mxu0 0.0
      %1022 = vmatpush.msra.mxu0 0.0
      %1023 = vmatpush.msra.mxu0 0.0
      %1024 = vmatpush.msra.mxu0 0.0
      %1025 = vmatpush.msra.mxu0 0.0
      %1026 = vmatpush.msra.mxu0 0.0
      %1027 = vmatpush.msra.mxu0 0.0
      %1028 = vmatpush.msra.mxu0 0.0
      %1029 = vmatpush.msra.mxu0 %v996
      %1030 = vmatmul.f32.gmra.mxu0 %v994
      %v1031 = vpop.f32.mrf.mxu0
      %v1032 = vadd.f32 0.0, %v1031
      %1033 = vdwg.mxu0
      %1034 = vmatpush.msra.mxu0 0.0
      %1035 = vmatpush.msra.mxu0 0.0
      %1036 = vmatpush.msra.mxu0 0.0
      %1037 = vmatpush.msra.mxu0 0.0
      %1038 = vmatpush.msra.mxu0 0.0
      %1039 = vmatpush.msra.mxu0 0.0
      %1040 = vmatpush.msra.mxu0 0.0
      %1041 = vmatpush.msra.mxu0 0.0
      %1042 = vmatpush.msra.mxu0 0.0
      %1043 = vmatpush.msra.mxu0 0.0
      %1044 = vmatpush.msra.mxu0 0.0
      %1045 = vmatpush.msra.mxu0 0.0
      %1046 = vmatpush.msra.mxu0 0.0
      %1047 = vmatpush.msra.mxu0 0.0
      %1048 = vmatpush.msra.mxu0 0.0
      %1049 = vmatpush.msra.mxu0 %v998
      %1050 = vmatmul.f32.gmra.mxu0 %v994
      %v1051 = vpop.f32.mrf.mxu0
      %v1052 = vadd.f32 0.0, %v1051
      %1053 = vdwg.mxu0
      %1054 = vmatpush.msra.mxu0 0.0
      %1055 = vmatpush.msra.mxu0 0.0
      %1056 = vmatpush.msra.mxu0 0.0
      %1057 = vmatpush.msra.mxu0 0.0
      %1058 = vmatpush.msra.mxu0 0.0
      %1059 = vmatpush.msra.mxu0 0.0
      %1060 = vmatpush.msra.mxu0 0.0
      %1061 = vmatpush.msra.mxu0 0.0
      %1062 = vmatpush.msra.mxu0 0.0
      %1063 = vmatpush.msra.mxu0 0.0
      %1064 = vmatpush.msra.mxu0 0.0
      %1065 = vmatpush.msra.mxu0 0.0
      %1066 = vmatpush.msra.mxu0 0.0
      %1067 = vmatpush.msra.mxu0 0.0
      %1068 = vmatpush.msra.mxu0 0.0
      %1069 = vmatpush.msra.mxu0 %v1000
      %1070 = vmatmul.f32.gmra.mxu0 %v994
      %v1071 = vpop.f32.mrf.mxu0
      %v1072 = vadd.f32 0.0, %v1071
      %1073 = vdwg.mxu0
      %1074 = vmatpush.msra.mxu0 0.0
      %1075 = vmatpush.msra.mxu0 0.0
      %1076 = vmatpush.msra.mxu0 0.0
      %1077 = vmatpush.msra.mxu0 0.0
      %1078 = vmatpush.msra.mxu0 0.0
      %1079 = vmatpush.msra.mxu0 0.0
      %1080 = vmatpush.msra.mxu0 0.0
      %1081 = vmatpush.msra.mxu0 0.0
      %1082 = vmatpush.msra.mxu0 0.0
      %1083 = vmatpush.msra.mxu0 0.0
      %1084 = vmatpush.msra.mxu0 0.0
      %1085 = vmatpush.msra.mxu0 0.0
      %1086 = vmatpush.msra.mxu0 0.0
      %1087 = vmatpush.msra.mxu0 0.0
      %1088 = vmatpush.msra.mxu0 0.0
      %1089 = vmatpush.msra.mxu0 %v1002
      %1090 = vmatmul.f32.gmra.mxu0 %v994
      %v1091 = vpop.f32.mrf.mxu0
      %v1092 = vadd.f32 0.0, %v1091
      %1093 = vdwg.mxu0
      %1094 = vmatpush.msra.mxu0 0.0
      %1095 = vmatpush.msra.mxu0 0.0
      %1096 = vmatpush.msra.mxu0 0.0
      %1097 = vmatpush.msra.mxu0 0.0
      %1098 = vmatpush.msra.mxu0 0.0
      %1099 = vmatpush.msra.mxu0 0.0
      %1100 = vmatpush.msra.mxu0 0.0
      %1101 = vmatpush.msra.mxu0 0.0
      %1102 = vmatpush.msra.mxu0 0.0
      %1103 = vmatpush.msra.mxu0 0.0
      %1104 = vmatpush.msra.mxu0 0.0
      %1105 = vmatpush.msra.mxu0 0.0
      %1106 = vmatpush.msra.mxu0 0.0
      %1107 = vmatpush.msra.mxu0 0.0
      %1108 = vmatpush.msra.mxu0 0.0
      %1109 = vmatpush.msra.mxu0 %v1004
      %1110 = vmatmul.f32.gmra.mxu0 %v994
      %v1111 = vpop.f32.mrf.mxu0
      %v1112 = vadd.f32 0.0, %v1111
      %1113 = vdwg.mxu0
      %1114 = vmatpush.msra.mxu0 0.0
      %1115 = vmatpush.msra.mxu0 0.0
      %1116 = vmatpush.msra.mxu0 0.0
      %1117 = vmatpush.msra.mxu0 0.0
      %1118 = vmatpush.msra.mxu0 0.0
      %1119 = vmatpush.msra.mxu0 0.0
      %1120 = vmatpush.msra.mxu0 0.0
      %1121 = vmatpush.msra.mxu0 0.0
      %1122 = vmatpush.msra.mxu0 0.0
      %1123 = vmatpush.msra.mxu0 0.0
      %1124 = vmatpush.msra.mxu0 0.0
      %1125 = vmatpush.msra.mxu0 0.0
      %1126 = vmatpush.msra.mxu0 0.0
      %1127 = vmatpush.msra.mxu0 0.0
      %1128 = vmatpush.msra.mxu0 0.0
      %1129 = vmatpush.msra.mxu0 %v1006
      %1130 = vmatmul.f32.gmra.mxu0 %v994
      %v1131 = vpop.f32.mrf.mxu0
      %v1132 = vadd.f32 0.0, %v1131
      %1133 = vdwg.mxu0
      %1134 = vmatpush.msra.mxu0 0.0
      %1135 = vmatpush.msra.mxu0 0.0
      %1136 = vmatpush.msra.mxu0 0.0
      %1137 = vmatpush.msra.mxu0 0.0
      %1138 = vmatpush.msra.mxu0 0.0
      %1139 = vmatpush.msra.mxu0 0.0
      %1140 = vmatpush.msra.mxu0 0.0
      %1141 = vmatpush.msra.mxu0 0.0
      %1142 = vmatpush.msra.mxu0 0.0
      %1143 = vmatpush.msra.mxu0 0.0
      %1144 = vmatpush.msra.mxu0 0.0
      %1145 = vmatpush.msra.mxu0 0.0
      %1146 = vmatpush.msra.mxu0 0.0
      %1147 = vmatpush.msra.mxu0 0.0
      %1148 = vmatpush.msra.mxu0 0.0
      %1149 = vmatpush.msra.mxu0 %v1008
      %1150 = vmatmul.f32.gmra.mxu0 %v994
      %v1151 = vpop.f32.mrf.mxu0
      %v1152 = vadd.f32 0.0, %v1151
      %1153 = vdwg.mxu0
      %1154 = vmatpush.msra.mxu0 0.0
      %1155 = vmatpush.msra.mxu0 0.0
      %1156 = vmatpush.msra.mxu0 0.0
      %1157 = vmatpush.msra.mxu0 0.0
      %1158 = vmatpush.msra.mxu0 0.0
      %1159 = vmatpush.msra.mxu0 0.0
      %1160 = vmatpush.msra.mxu0 0.0
      %1161 = vmatpush.msra.mxu0 0.0
      %1162 = vmatpush.msra.mxu0 0.0
      %1163 = vmatpush.msra.mxu0 0.0
      %1164 = vmatpush.msra.mxu0 0.0
      %1165 = vmatpush.msra.mxu0 0.0
      %1166 = vmatpush.msra.mxu0 0.0
      %1167 = vmatpush.msra.mxu0 0.0
      %1168 = vmatpush.msra.mxu0 0.0
      %1169 = vmatpush.msra.mxu0 %v1010
      %1170 = vmatmul.f32.gmra.mxu0 %v994
      %v1171 = vpop.f32.mrf.mxu0
      %v1172 = vadd.f32 0.0, %v1171
      %1173 = vdwg.mxu0
      %1174 = vmatpush.msra.mxu0 0.0
      %1175 = vmatpush.msra.mxu0 0.0
      %1176 = vmatpush.msra.mxu0 0.0
      %1177 = vmatpush.msra.mxu0 0.0
      %1178 = vmatpush.msra.mxu0 0.0
      %1179 = vmatpush.msra.mxu0 0.0
      %1180 = vmatpush.msra.mxu0 0.0
      %1181 = vmatpush.msra.mxu0 0.0
      %1182 = vmatpush.msra.mxu0 0.0
      %1183 = vmatpush.msra.mxu0 0.0
      %1184 = vmatpush.msra.mxu0 0.0
      %1185 = vmatpush.msra.mxu0 0.0
      %1186 = vmatpush.msra.mxu0 0.0
      %1187 = vmatpush.msra.mxu0 0.0
      %1188 = vmatpush.msra.mxu0 0.0
      %1189 = vmatpush.msra.mxu0 %v1012
      %1190 = vmatmul.f32.gmra.mxu0 %v994
      %v1191 = vpop.f32.mrf.mxu0
      %v1192 = vadd.f32 0.0, %v1191
      %1193 = vdwg.mxu0
      %v1194 = vadd.f32 %v924, %v1032
      %v1195 = vadd.f32 %v925, %v1052
      %v1196 = vadd.f32 %v926, %v1072
      %v1197 = vadd.f32 %v927, %v1092
      %v1198 = vadd.f32 %v928, %v1112
      %v1199 = vadd.f32 %v929, %v1132
      %v1200 = vadd.f32 %v930, %v1152
      %v1201 = vadd.f32 %v931, %v1172
      %v1202 = vadd.f32 %v932, %v1192
      %v1203 = vld [vmem:[%s165] sm:$0xff]
      %v1204 = vld [vmem:[%s165 + $0x8] sm:$0xff]
      %v1205 = vld [vmem:[%s165 + $0x10] sm:$0xff]
      %v1206 = vld [vmem:[%s165 + $0x18] sm:$0xff]
      %v1207 = vld [vmem:[%s165 + $0x20] sm:$0xff]
      %s1208 = scalar_lea.vmem %s1, 32
      %v1209 = vld [vmem:[%s1208] sm:$0xff]
      %1215 = vst [vmem:[#allocation1] ss:$2 sm:$0xff] %v1203
      %s1216 = scalar_lea.vmem [#allocation1], 16
      %1217 = vst [vmem:[%s1216] ss:$2 sm:$0xff] %v1204
      %s1218 = scalar_lea.vmem [#allocation1], 32
      %1219 = vst [vmem:[%s1218] ss:$2 sm:$0xff] %v1205
      %s1220 = scalar_lea.vmem [#allocation1], 48
      %1221 = vst [vmem:[%s1220] ss:$2 sm:$0xff] %v1206
      %v1222 = vld.sshfl [vmem:[#allocation1] sm:$0xff pattern:$0x75316420]
      %v1223 = vld.sshfl [vmem:[#allocation1 + $0x8] sm:$0xff pattern:$0x75316420]
      %v1224 = vld.sshfl [vmem:[#allocation1 + $0x10] sm:$0xff pattern:$0x75316420]
      %v1225 = vld.sshfl [vmem:[#allocation1 + $0x18] sm:$0xff pattern:$0x75316420]
      %v1226 = vld.sshfl [vmem:[#allocation1 + $0x20] sm:$0xff pattern:$0x75316420]
      %v1227 = vld.sshfl [vmem:[#allocation1 + $0x28] sm:$0xff pattern:$0x75316420]
      %v1228 = vld.sshfl [vmem:[#allocation1 + $0x30] sm:$0xff pattern:$0x75316420]
      %v1229 = vld.sshfl [vmem:[#allocation1 + $0x38] sm:$0xff pattern:$0x75316420]
      %1230 = vst [vmem:[#allocation1] ss:$2 sm:$0xff] %v1207
      %v1231 = vld.sshfl [vmem:[#allocation1] sm:$0xff pattern:$0x75316420]
      %v1232 = vld.sshfl [vmem:[#allocation1 + $0x8] sm:$0xff pattern:$0x75316420]
      %1233 = vrot.lane.b32.xlu0 %v1222, 93
      %v1234 = vpop.permute.xlu0 %1233
      %1235 = vrot.lane.b32.xlu0 %v1223, 93
      %v1236 = vpop.permute.xlu0 %1235
      %1237 = vrot.lane.b32.xlu0 %v1224, 93
      %v1238 = vpop.permute.xlu0 %1237
      %1239 = vrot.lane.b32.xlu0 %v1225, 93
      %v1240 = vpop.permute.xlu0 %1239
      %1241 = vrot.lane.b32.xlu0 %v1226, 93
      %v1242 = vpop.permute.xlu0 %1241
      %1243 = vrot.lane.b32.xlu0 %v1227, 93
      %v1244 = vpop.permute.xlu0 %1243
      %1245 = vrot.lane.b32.xlu0 %v1228, 93
      %v1246 = vpop.permute.xlu0 %1245
      %1247 = vrot.lane.b32.xlu0 %v1229, 93
      %v1248 = vpop.permute.xlu0 %1247
      %1249 = vrot.lane.b32.xlu0 %v1231, 93
      %v1250 = vpop.permute.xlu0 %1249
      %1251 = vrot.lane.b32.xlu0 %v1232, 93
      %v1252 = vpop.permute.xlu0 %1251
      %vm1253 = vcmask 760832
      %v1254 = vsel %vm1253, %v1234, %v1236
      %v1255 = vsel %vm1253, %v1236, %v1238
      %v1256 = vsel %vm1253, %v1238, %v1240
      %v1257 = vsel %vm1253, %v1240, %v1242
      %v1258 = vsel %vm1253, %v1242, %v1244
      %v1259 = vsel %vm1253, %v1244, %v1246
      %v1260 = vsel %vm1253, %v1246, %v1248
      %v1261 = vsel %vm1253, %v1248, %v1250
      %v1262 = vsel %vm1253, %v1250, %v1252
      %v1264 = vsel %vm237, %v1209, 0
      %v1266 = vsel %vm241, %v1254, 0
      %v1268 = vsel %vm241, %v1255, 0
      %v1270 = vsel %vm241, %v1256, 0
      %v1272 = vsel %vm241, %v1257, 0
      %v1274 = vsel %vm241, %v1258, 0
      %v1276 = vsel %vm241, %v1259, 0
      %v1278 = vsel %vm241, %v1260, 0
      %v1280 = vsel %vm241, %v1261, 0
      %v1282 = vsel %vm241, %v1262, 0
      %1284 = vmatpush.msra.mxu0 0.0
      %1285 = vmatpush.msra.mxu0 0.0
      %1286 = vmatpush.msra.mxu0 0.0
      %1287 = vmatpush.msra.mxu0 0.0
      %1288 = vmatpush.msra.mxu0 0.0
      %1289 = vmatpush.msra.mxu0 0.0
      %1290 = vmatpush.msra.mxu0 0.0
      %1291 = vmatpush.msra.mxu0 0.0
      %1292 = vmatpush.msra.mxu0 0.0
      %1293 = vmatpush.msra.mxu0 0.0
      %1294 = vmatpush.msra.mxu0 0.0
      %1295 = vmatpush.msra.mxu0 0.0
      %1296 = vmatpush.msra.mxu0 0.0
      %1297 = vmatpush.msra.mxu0 0.0
      %1298 = vmatpush.msra.mxu0 0.0
      %1299 = vmatpush.msra.mxu0 %v1266
      %1300 = vmatmul.f32.gmra.mxu0 %v1264
      %v1301 = vpop.f32.mrf.mxu0
      %v1302 = vadd.f32 0.0, %v1301
      %1303 = vdwg.mxu0
      %1304 = vmatpush.msra.mxu0 0.0
      %1305 = vmatpush.msra.mxu0 0.0
      %1306 = vmatpush.msra.mxu0 0.0
      %1307 = vmatpush.msra.mxu0 0.0
      %1308 = vmatpush.msra.mxu0 0.0
      %1309 = vmatpush.msra.mxu0 0.0
      %1310 = vmatpush.msra.mxu0 0.0
      %1311 = vmatpush.msra.mxu0 0.0
      %1312 = vmatpush.msra.mxu0 0.0
      %1313 = vmatpush.msra.mxu0 0.0
      %1314 = vmatpush.msra.mxu0 0.0
      %1315 = vmatpush.msra.mxu0 0.0
      %1316 = vmatpush.msra.mxu0 0.0
      %1317 = vmatpush.msra.mxu0 0.0
      %1318 = vmatpush.msra.mxu0 0.0
      %1319 = vmatpush.msra.mxu0 %v1268
      %1320 = vmatmul.f32.gmra.mxu0 %v1264
      %v1321 = vpop.f32.mrf.mxu0
      %v1322 = vadd.f32 0.0, %v1321
      %1323 = vdwg.mxu0
      %1324 = vmatpush.msra.mxu0 0.0
      %1325 = vmatpush.msra.mxu0 0.0
      %1326 = vmatpush.msra.mxu0 0.0
      %1327 = vmatpush.msra.mxu0 0.0
      %1328 = vmatpush.msra.mxu0 0.0
      %1329 = vmatpush.msra.mxu0 0.0
      %1330 = vmatpush.msra.mxu0 0.0
      %1331 = vmatpush.msra.mxu0 0.0
      %1332 = vmatpush.msra.mxu0 0.0
      %1333 = vmatpush.msra.mxu0 0.0
      %1334 = vmatpush.msra.mxu0 0.0
      %1335 = vmatpush.msra.mxu0 0.0
      %1336 = vmatpush.msra.mxu0 0.0
      %1337 = vmatpush.msra.mxu0 0.0
      %1338 = vmatpush.msra.mxu0 0.0
      %1339 = vmatpush.msra.mxu0 %v1270
      %1340 = vmatmul.f32.gmra.mxu0 %v1264
      %v1341 = vpop.f32.mrf.mxu0
      %v1342 = vadd.f32 0.0, %v1341
      %1343 = vdwg.mxu0
      %1344 = vmatpush.msra.mxu0 0.0
      %1345 = vmatpush.msra.mxu0 0.0
      %1346 = vmatpush.msra.mxu0 0.0
      %1347 = vmatpush.msra.mxu0 0.0
      %1348 = vmatpush.msra.mxu0 0.0
      %1349 = vmatpush.msra.mxu0 0.0
      %1350 = vmatpush.msra.mxu0 0.0
      %1351 = vmatpush.msra.mxu0 0.0
      %1352 = vmatpush.msra.mxu0 0.0
      %1353 = vmatpush.msra.mxu0 0.0
      %1354 = vmatpush.msra.mxu0 0.0
      %1355 = vmatpush.msra.mxu0 0.0
      %1356 = vmatpush.msra.mxu0 0.0
      %1357 = vmatpush.msra.mxu0 0.0
      %1358 = vmatpush.msra.mxu0 0.0
      %1359 = vmatpush.msra.mxu0 %v1272
      %1360 = vmatmul.f32.gmra.mxu0 %v1264
      %v1361 = vpop.f32.mrf.mxu0
      %v1362 = vadd.f32 0.0, %v1361
      %1363 = vdwg.mxu0
      %1364 = vmatpush.msra.mxu0 0.0
      %1365 = vmatpush.msra.mxu0 0.0
      %1366 = vmatpush.msra.mxu0 0.0
      %1367 = vmatpush.msra.mxu0 0.0
      %1368 = vmatpush.msra.mxu0 0.0
      %1369 = vmatpush.msra.mxu0 0.0
      %1370 = vmatpush.msra.mxu0 0.0
      %1371 = vmatpush.msra.mxu0 0.0
      %1372 = vmatpush.msra.mxu0 0.0
      %1373 = vmatpush.msra.mxu0 0.0
      %1374 = vmatpush.msra.mxu0 0.0
      %1375 = vmatpush.msra.mxu0 0.0
      %1376 = vmatpush.msra.mxu0 0.0
      %1377 = vmatpush.msra.mxu0 0.0
      %1378 = vmatpush.msra.mxu0 0.0
      %1379 = vmatpush.msra.mxu0 %v1274
      %1380 = vmatmul.f32.gmra.mxu0 %v1264
      %v1381 = vpop.f32.mrf.mxu0
      %v1382 = vadd.f32 0.0, %v1381
      %1383 = vdwg.mxu0
      %1384 = vmatpush.msra.mxu0 0.0
      %1385 = vmatpush.msra.mxu0 0.0
      %1386 = vmatpush.msra.mxu0 0.0
      %1387 = vmatpush.msra.mxu0 0.0
      %1388 = vmatpush.msra.mxu0 0.0
      %1389 = vmatpush.msra.mxu0 0.0
      %1390 = vmatpush.msra.mxu0 0.0
      %1391 = vmatpush.msra.mxu0 0.0
      %1392 = vmatpush.msra.mxu0 0.0
      %1393 = vmatpush.msra.mxu0 0.0
      %1394 = vmatpush.msra.mxu0 0.0
      %1395 = vmatpush.msra.mxu0 0.0
      %1396 = vmatpush.msra.mxu0 0.0
      %1397 = vmatpush.msra.mxu0 0.0
      %1398 = vmatpush.msra.mxu0 0.0
      %1399 = vmatpush.msra.mxu0 %v1276
      %1400 = vmatmul.f32.gmra.mxu0 %v1264
      %v1401 = vpop.f32.mrf.mxu0
      %v1402 = vadd.f32 0.0, %v1401
      %1403 = vdwg.mxu0
      %1404 = vmatpush.msra.mxu0 0.0
      %1405 = vmatpush.msra.mxu0 0.0
      %1406 = vmatpush.msra.mxu0 0.0
      %1407 = vmatpush.msra.mxu0 0.0
      %1408 = vmatpush.msra.mxu0 0.0
      %1409 = vmatpush.msra.mxu0 0.0
      %1410 = vmatpush.msra.mxu0 0.0
      %1411 = vmatpush.msra.mxu0 0.0
      %1412 = vmatpush.msra.mxu0 0.0
      %1413 = vmatpush.msra.mxu0 0.0
      %1414 = vmatpush.msra.mxu0 0.0
      %1415 = vmatpush.msra.mxu0 0.0
      %1416 = vmatpush.msra.mxu0 0.0
      %1417 = vmatpush.msra.mxu0 0.0
      %1418 = vmatpush.msra.mxu0 0.0
      %1419 = vmatpush.msra.mxu0 %v1278
      %1420 = vmatmul.f32.gmra.mxu0 %v1264
      %v1421 = vpop.f32.mrf.mxu0
      %v1422 = vadd.f32 0.0, %v1421
      %1423 = vdwg.mxu0
      %1424 = vmatpush.msra.mxu0 0.0
      %1425 = vmatpush.msra.mxu0 0.0
      %1426 = vmatpush.msra.mxu0 0.0
      %1427 = vmatpush.msra.mxu0 0.0
      %1428 = vmatpush.msra.mxu0 0.0
      %1429 = vmatpush.msra.mxu0 0.0
      %1430 = vmatpush.msra.mxu0 0.0
      %1431 = vmatpush.msra.mxu0 0.0
      %1432 = vmatpush.msra.mxu0 0.0
      %1433 = vmatpush.msra.mxu0 0.0
      %1434 = vmatpush.msra.mxu0 0.0
      %1435 = vmatpush.msra.mxu0 0.0
      %1436 = vmatpush.msra.mxu0 0.0
      %1437 = vmatpush.msra.mxu0 0.0
      %1438 = vmatpush.msra.mxu0 0.0
      %1439 = vmatpush.msra.mxu0 %v1280
      %1440 = vmatmul.f32.gmra.mxu0 %v1264
      %v1441 = vpop.f32.mrf.mxu0
      %v1442 = vadd.f32 0.0, %v1441
      %1443 = vdwg.mxu0
      %1444 = vmatpush.msra.mxu0 0.0
      %1445 = vmatpush.msra.mxu0 0.0
      %1446 = vmatpush.msra.mxu0 0.0
      %1447 = vmatpush.msra.mxu0 0.0
      %1448 = vmatpush.msra.mxu0 0.0
      %1449 = vmatpush.msra.mxu0 0.0
      %1450 = vmatpush.msra.mxu0 0.0
      %1451 = vmatpush.msra.mxu0 0.0
      %1452 = vmatpush.msra.mxu0 0.0
      %1453 = vmatpush.msra.mxu0 0.0
      %1454 = vmatpush.msra.mxu0 0.0
      %1455 = vmatpush.msra.mxu0 0.0
      %1456 = vmatpush.msra.mxu0 0.0
      %1457 = vmatpush.msra.mxu0 0.0
      %1458 = vmatpush.msra.mxu0 0.0
      %1459 = vmatpush.msra.mxu0 %v1282
      %1460 = vmatmul.f32.gmra.mxu0 %v1264
      %v1461 = vpop.f32.mrf.mxu0
      %v1462 = vadd.f32 0.0, %v1461
      %1463 = vdwg.mxu0
      %v1464 = vadd.f32 %v1194, %v1302
      %v1465 = vadd.f32 %v1195, %v1322
      %v1466 = vadd.f32 %v1196, %v1342
      %v1467 = vadd.f32 %v1197, %v1362
      %v1468 = vadd.f32 %v1198, %v1382
      %v1469 = vadd.f32 %v1199, %v1402
      %v1470 = vadd.f32 %v1200, %v1422
      %v1471 = vadd.f32 %v1201, %v1442
      %v1472 = vadd.f32 %v1202, %v1462
      %v1473 = vld [vmem:[%s165] sm:$0xff]
      %v1474 = vld [vmem:[%s165 + $0x8] sm:$0xff]
      %v1475 = vld [vmem:[%s165 + $0x10] sm:$0xff]
      %v1476 = vld [vmem:[%s165 + $0x18] sm:$0xff]
      %v1477 = vld [vmem:[%s165 + $0x20] sm:$0xff]
      %s1478 = scalar_lea.vmem %s1, 40
      %v1479 = vld [vmem:[%s1478] sm:$0xff]
      %1485 = vst [vmem:[#allocation1] ss:$2 sm:$0xff] %v1473
      %s1486 = scalar_lea.vmem [#allocation1], 16
      %1487 = vst [vmem:[%s1486] ss:$2 sm:$0xff] %v1474
      %s1488 = scalar_lea.vmem [#allocation1], 32
      %1489 = vst [vmem:[%s1488] ss:$2 sm:$0xff] %v1475
      %s1490 = scalar_lea.vmem [#allocation1], 48
      %1491 = vst [vmem:[%s1490] ss:$2 sm:$0xff] %v1476
      %v1492 = vld.sshfl [vmem:[#allocation1] sm:$0xff pattern:$0x75316420]
      %v1493 = vld.sshfl [vmem:[#allocation1 + $0x8] sm:$0xff pattern:$0x75316420]
      %v1494 = vld.sshfl [vmem:[#allocation1 + $0x10] sm:$0xff pattern:$0x75316420]
      %v1495 = vld.sshfl [vmem:[#allocation1 + $0x18] sm:$0xff pattern:$0x75316420]
      %v1496 = vld.sshfl [vmem:[#allocation1 + $0x20] sm:$0xff pattern:$0x75316420]
      %v1497 = vld.sshfl [vmem:[#allocation1 + $0x28] sm:$0xff pattern:$0x75316420]
      %v1498 = vld.sshfl [vmem:[#allocation1 + $0x30] sm:$0xff pattern:$0x75316420]
      %v1499 = vld.sshfl [vmem:[#allocation1 + $0x38] sm:$0xff pattern:$0x75316420]
      %1500 = vst [vmem:[#allocation1] ss:$2 sm:$0xff] %v1477
      %v1501 = vld.sshfl [vmem:[#allocation1] sm:$0xff pattern:$0x75316420]
      %v1502 = vld.sshfl [vmem:[#allocation1 + $0x8] sm:$0xff pattern:$0x75316420]
      %1503 = vrot.lane.b32.xlu0 %v1492, 92
      %v1504 = vpop.permute.xlu0 %1503
      %1505 = vrot.lane.b32.xlu0 %v1493, 92
      %v1506 = vpop.permute.xlu0 %1505
      %1507 = vrot.lane.b32.xlu0 %v1494, 92
      %v1508 = vpop.permute.xlu0 %1507
      %1509 = vrot.lane.b32.xlu0 %v1495, 92
      %v1510 = vpop.permute.xlu0 %1509
      %1511 = vrot.lane.b32.xlu0 %v1496, 92
      %v1512 = vpop.permute.xlu0 %1511
      %1513 = vrot.lane.b32.xlu0 %v1497, 92
      %v1514 = vpop.permute.xlu0 %1513
      %1515 = vrot.lane.b32.xlu0 %v1498, 92
      %v1516 = vpop.permute.xlu0 %1515
      %1517 = vrot.lane.b32.xlu0 %v1499, 92
      %v1518 = vpop.permute.xlu0 %1517
      %1519 = vrot.lane.b32.xlu0 %v1501, 92
      %v1520 = vpop.permute.xlu0 %1519
      %1521 = vrot.lane.b32.xlu0 %v1502, 92
      %v1522 = vpop.permute.xlu0 %1521
      %vm1523 = vcmask 752640
      %v1524 = vsel %vm1523, %v1504, %v1506
      %v1525 = vsel %vm1523, %v1506, %v1508
      %v1526 = vsel %vm1523, %v1508, %v1510
      %v1527 = vsel %vm1523, %v1510, %v1512
      %v1528 = vsel %vm1523, %v1512, %v1514
      %v1529 = vsel %vm1523, %v1514, %v1516
      %v1530 = vsel %vm1523, %v1516, %v1518
      %v1531 = vsel %vm1523, %v1518, %v1520
      %v1532 = vsel %vm1523, %v1520, %v1522
      %v1534 = vsel %vm237, %v1479, 0
      %v1536 = vsel %vm241, %v1524, 0
      %v1538 = vsel %vm241, %v1525, 0
      %v1540 = vsel %vm241, %v1526, 0
      %v1542 = vsel %vm241, %v1527, 0
      %v1544 = vsel %vm241, %v1528, 0
      %v1546 = vsel %vm241, %v1529, 0
      %v1548 = vsel %vm241, %v1530, 0
      %v1550 = vsel %vm241, %v1531, 0
      %v1552 = vsel %vm241, %v1532, 0
      %1554 = vmatpush.msra.mxu0 0.0
      %1555 = vmatpush.msra.mxu0 0.0
      %1556 = vmatpush.msra.mxu0 0.0
      %1557 = vmatpush.msra.mxu0 0.0
      %1558 = vmatpush.msra.mxu0 0.0
      %1559 = vmatpush.msra.mxu0 0.0
      %1560 = vmatpush.msra.mxu0 0.0
      %1561 = vmatpush.msra.mxu0 0.0
      %1562 = vmatpush.msra.mxu0 0.0
      %1563 = vmatpush.msra.mxu0 0.0
      %1564 = vmatpush.msra.mxu0 0.0
      %1565 = vmatpush.msra.mxu0 0.0
      %1566 = vmatpush.msra.mxu0 0.0
      %1567 = vmatpush.msra.mxu0 0.0
      %1568 = vmatpush.msra.mxu0 0.0
      %1569 = vmatpush.msra.mxu0 %v1536
      %1570 = vmatmul.f32.gmra.mxu0 %v1534
      %v1571 = vpop.f32.mrf.mxu0
      %v1572 = vadd.f32 0.0, %v1571
      %1573 = vdwg.mxu0
      %1574 = vmatpush.msra.mxu0 0.0
      %1575 = vmatpush.msra.mxu0 0.0
      %1576 = vmatpush.msra.mxu0 0.0
      %1577 = vmatpush.msra.mxu0 0.0
      %1578 = vmatpush.msra.mxu0 0.0
      %1579 = vmatpush.msra.mxu0 0.0
      %1580 = vmatpush.msra.mxu0 0.0
      %1581 = vmatpush.msra.mxu0 0.0
      %1582 = vmatpush.msra.mxu0 0.0
      %1583 = vmatpush.msra.mxu0 0.0
      %1584 = vmatpush.msra.mxu0 0.0
      %1585 = vmatpush.msra.mxu0 0.0
      %1586 = vmatpush.msra.mxu0 0.0
      %1587 = vmatpush.msra.mxu0 0.0
      %1588 = vmatpush.msra.mxu0 0.0
      %1589 = vmatpush.msra.mxu0 %v1538
      %1590 = vmatmul.f32.gmra.mxu0 %v1534
      %v1591 = vpop.f32.mrf.mxu0
      %v1592 = vadd.f32 0.0, %v1591
      %1593 = vdwg.mxu0
      %1594 = vmatpush.msra.mxu0 0.0
      %1595 = vmatpush.msra.mxu0 0.0
      %1596 = vmatpush.msra.mxu0 0.0
      %1597 = vmatpush.msra.mxu0 0.0
      %1598 = vmatpush.msra.mxu0 0.0
      %1599 = vmatpush.msra.mxu0 0.0
      %1600 = vmatpush.msra.mxu0 0.0
      %1601 = vmatpush.msra.mxu0 0.0
      %1602 = vmatpush.msra.mxu0 0.0
      %1603 = vmatpush.msra.mxu0 0.0
      %1604 = vmatpush.msra.mxu0 0.0
      %1605 = vmatpush.msra.mxu0 0.0
      %1606 = vmatpush.msra.mxu0 0.0
      %1607 = vmatpush.msra.mxu0 0.0
      %1608 = vmatpush.msra.mxu0 0.0
      %1609 = vmatpush.msra.mxu0 %v1540
      %1610 = vmatmul.f32.gmra.mxu0 %v1534
      %v1611 = vpop.f32.mrf.mxu0
      %v1612 = vadd.f32 0.0, %v1611
      %1613 = vdwg.mxu0
      %1614 = vmatpush.msra.mxu0 0.0
      %1615 = vmatpush.msra.mxu0 0.0
      %1616 = vmatpush.msra.mxu0 0.0
      %1617 = vmatpush.msra.mxu0 0.0
      %1618 = vmatpush.msra.mxu0 0.0
      %1619 = vmatpush.msra.mxu0 0.0
      %1620 = vmatpush.msra.mxu0 0.0
      %1621 = vmatpush.msra.mxu0 0.0
      %1622 = vmatpush.msra.mxu0 0.0
      %1623 = vmatpush.msra.mxu0 0.0
      %1624 = vmatpush.msra.mxu0 0.0
      %1625 = vmatpush.msra.mxu0 0.0
      %1626 = vmatpush.msra.mxu0 0.0
      %1627 = vmatpush.msra.mxu0 0.0
      %1628 = vmatpush.msra.mxu0 0.0
      %1629 = vmatpush.msra.mxu0 %v1542
      %1630 = vmatmul.f32.gmra.mxu0 %v1534
      %v1631 = vpop.f32.mrf.mxu0
      %v1632 = vadd.f32 0.0, %v1631
      %1633 = vdwg.mxu0
      %1634 = vmatpush.msra.mxu0 0.0
      %1635 = vmatpush.msra.mxu0 0.0
      %1636 = vmatpush.msra.mxu0 0.0
      %1637 = vmatpush.msra.mxu0 0.0
      %1638 = vmatpush.msra.mxu0 0.0
      %1639 = vmatpush.msra.mxu0 0.0
      %1640 = vmatpush.msra.mxu0 0.0
      %1641 = vmatpush.msra.mxu0 0.0
      %1642 = vmatpush.msra.mxu0 0.0
      %1643 = vmatpush.msra.mxu0 0.0
      %1644 = vmatpush.msra.mxu0 0.0
      %1645 = vmatpush.msra.mxu0 0.0
      %1646 = vmatpush.msra.mxu0 0.0
      %1647 = vmatpush.msra.mxu0 0.0
      %1648 = vmatpush.msra.mxu0 0.0
      %1649 = vmatpush.msra.mxu0 %v1544
      %1650 = vmatmul.f32.gmra.mxu0 %v1534
      %v1651 = vpop.f32.mrf.mxu0
      %v1652 = vadd.f32 0.0, %v1651
      %1653 = vdwg.mxu0
      %1654 = vmatpush.msra.mxu0 0.0
      %1655 = vmatpush.msra.mxu0 0.0
      %1656 = vmatpush.msra.mxu0 0.0
      %1657 = vmatpush.msra.mxu0 0.0
      %1658 = vmatpush.msra.mxu0 0.0
      %1659 = vmatpush.msra.mxu0 0.0
      %1660 = vmatpush.msra.mxu0 0.0
      %1661 = vmatpush.msra.mxu0 0.0
      %1662 = vmatpush.msra.mxu0 0.0
      %1663 = vmatpush.msra.mxu0 0.0
      %1664 = vmatpush.msra.mxu0 0.0
      %1665 = vmatpush.msra.mxu0 0.0
      %1666 = vmatpush.msra.mxu0 0.0
      %1667 = vmatpush.msra.mxu0 0.0
      %1668 = vmatpush.msra.mxu0 0.0
      %1669 = vmatpush.msra.mxu0 %v1546
      %1670 = vmatmul.f32.gmra.mxu0 %v1534
      %v1671 = vpop.f32.mrf.mxu0
      %v1672 = vadd.f32 0.0, %v1671
      %1673 = vdwg.mxu0
      %1674 = vmatpush.msra.mxu0 0.0
      %1675 = vmatpush.msra.mxu0 0.0
      %1676 = vmatpush.msra.mxu0 0.0
      %1677 = vmatpush.msra.mxu0 0.0
      %1678 = vmatpush.msra.mxu0 0.0
      %1679 = vmatpush.msra.mxu0 0.0
      %1680 = vmatpush.msra.mxu0 0.0
      %1681 = vmatpush.msra.mxu0 0.0
      %1682 = vmatpush.msra.mxu0 0.0
      %1683 = vmatpush.msra.mxu0 0.0
      %1684 = vmatpush.msra.mxu0 0.0
      %1685 = vmatpush.msra.mxu0 0.0
      %1686 = vmatpush.msra.mxu0 0.0
      %1687 = vmatpush.msra.mxu0 0.0
      %1688 = vmatpush.msra.mxu0 0.0
      %1689 = vmatpush.msra.mxu0 %v1548
      %1690 = vmatmul.f32.gmra.mxu0 %v1534
      %v1691 = vpop.f32.mrf.mxu0
      %v1692 = vadd.f32 0.0, %v1691
      %1693 = vdwg.mxu0
      %1694 = vmatpush.msra.mxu0 0.0
      %1695 = vmatpush.msra.mxu0 0.0
      %1696 = vmatpush.msra.mxu0 0.0
      %1697 = vmatpush.msra.mxu0 0.0
      %1698 = vmatpush.msra.mxu0 0.0
      %1699 = vmatpush.msra.mxu0 0.0
      %1700 = vmatpush.msra.mxu0 0.0
      %1701 = vmatpush.msra.mxu0 0.0
      %1702 = vmatpush.msra.mxu0 0.0
      %1703 = vmatpush.msra.mxu0 0.0
      %1704 = vmatpush.msra.mxu0 0.0
      %1705 = vmatpush.msra.mxu0 0.0
      %1706 = vmatpush.msra.mxu0 0.0
      %1707 = vmatpush.msra.mxu0 0.0
      %1708 = vmatpush.msra.mxu0 0.0
      %1709 = vmatpush.msra.mxu0 %v1550
      %1710 = vmatmul.f32.gmra.mxu0 %v1534
      %v1711 = vpop.f32.mrf.mxu0
      %v1712 = vadd.f32 0.0, %v1711
      %1713 = vdwg.mxu0
      %1714 = vmatpush.msra.mxu0 0.0
      %1715 = vmatpush.msra.mxu0 0.0
      %1716 = vmatpush.msra.mxu0 0.0
      %1717 = vmatpush.msra.mxu0 0.0
      %1718 = vmatpush.msra.mxu0 0.0
      %1719 = vmatpush.msra.mxu0 0.0
      %1720 = vmatpush.msra.mxu0 0.0
      %1721 = vmatpush.msra.mxu0 0.0
      %1722 = vmatpush.msra.mxu0 0.0
      %1723 = vmatpush.msra.mxu0 0.0
      %1724 = vmatpush.msra.mxu0 0.0
      %1725 = vmatpush.msra.mxu0 0.0
      %1726 = vmatpush.msra.mxu0 0.0
      %1727 = vmatpush.msra.mxu0 0.0
      %1728 = vmatpush.msra.mxu0 0.0
      %1729 = vmatpush.msra.mxu0 %v1552
      %1730 = vmatmul.f32.gmra.mxu0 %v1534
      %v1731 = vpop.f32.mrf.mxu0
      %v1732 = vadd.f32 0.0, %v1731
      %1733 = vdwg.mxu0
      %v1734 = vadd.f32 %v1464, %v1572
      %v1735 = vadd.f32 %v1465, %v1592
      %v1736 = vadd.f32 %v1466, %v1612
      %v1737 = vadd.f32 %v1467, %v1632
      %v1738 = vadd.f32 %v1468, %v1652
      %v1739 = vadd.f32 %v1469, %v1672
      %v1740 = vadd.f32 %v1470, %v1692
      %v1741 = vadd.f32 %v1471, %v1712
      %v1742 = vadd.f32 %v1472, %v1732
      %v1743 = vld [vmem:[%s165] sm:$0xff]
      %v1744 = vld [vmem:[%s165 + $0x8] sm:$0xff]
      %v1745 = vld [vmem:[%s165 + $0x10] sm:$0xff]
      %v1746 = vld [vmem:[%s165 + $0x18] sm:$0xff]
      %v1747 = vld [vmem:[%s165 + $0x20] sm:$0xff]
      %s1748 = scalar_lea.vmem %s1, 48
      %v1749 = vld [vmem:[%s1748] sm:$0xff]
      %1755 = vst [vmem:[#allocation1] ss:$2 sm:$0xff] %v1743
      %s1756 = scalar_lea.vmem [#allocation1], 16
      %1757 = vst [vmem:[%s1756] ss:$2 sm:$0xff] %v1744
      %s1758 = scalar_lea.vmem [#allocation1], 32
      %1759 = vst [vmem:[%s1758] ss:$2 sm:$0xff] %v1745
      %s1760 = scalar_lea.vmem [#allocation1], 48
      %1761 = vst [vmem:[%s1760] ss:$2 sm:$0xff] %v1746
      %v1762 = vld.sshfl [vmem:[#allocation1] sm:$0xff pattern:$0x75316420]
      %v1763 = vld.sshfl [vmem:[#allocation1 + $0x8] sm:$0xff pattern:$0x75316420]
      %v1764 = vld.sshfl [vmem:[#allocation1 + $0x10] sm:$0xff pattern:$0x75316420]
      %v1765 = vld.sshfl [vmem:[#allocation1 + $0x18] sm:$0xff pattern:$0x75316420]
      %v1766 = vld.sshfl [vmem:[#allocation1 + $0x20] sm:$0xff pattern:$0x75316420]
      %v1767 = vld.sshfl [vmem:[#allocation1 + $0x28] sm:$0xff pattern:$0x75316420]
      %v1768 = vld.sshfl [vmem:[#allocation1 + $0x30] sm:$0xff pattern:$0x75316420]
      %v1769 = vld.sshfl [vmem:[#allocation1 + $0x38] sm:$0xff pattern:$0x75316420]
      %1770 = vst [vmem:[#allocation1] ss:$2 sm:$0xff] %v1747
      %v1771 = vld.sshfl [vmem:[#allocation1] sm:$0xff pattern:$0x75316420]
      %v1772 = vld.sshfl [vmem:[#allocation1 + $0x8] sm:$0xff pattern:$0x75316420]
      %1773 = vrot.lane.b32.xlu0 %v1762, 60
      %v1774 = vpop.permute.xlu0 %1773
      %1775 = vrot.lane.b32.xlu0 %v1763, 60
      %v1776 = vpop.permute.xlu0 %1775
      %1777 = vrot.lane.b32.xlu0 %v1764, 60
      %v1778 = vpop.permute.xlu0 %1777
      %1779 = vrot.lane.b32.xlu0 %v1765, 60
      %v1780 = vpop.permute.xlu0 %1779
      %1781 = vrot.lane.b32.xlu0 %v1766, 60
      %v1782 = vpop.permute.xlu0 %1781
      %1783 = vrot.lane.b32.xlu0 %v1767, 60
      %v1784 = vpop.permute.xlu0 %1783
      %1785 = vrot.lane.b32.xlu0 %v1768, 60
      %v1786 = vpop.permute.xlu0 %1785
      %1787 = vrot.lane.b32.xlu0 %v1769, 60
      %v1788 = vpop.permute.xlu0 %1787
      %1789 = vrot.lane.b32.xlu0 %v1771, 60
      %v1790 = vpop.permute.xlu0 %1789
      %1791 = vrot.lane.b32.xlu0 %v1772, 60
      %v1792 = vpop.permute.xlu0 %1791
      %vm1793 = vcmask 490496
      %v1794 = vsel %vm1793, %v1774, %v1776
      %v1795 = vsel %vm1793, %v1776, %v1778
      %v1796 = vsel %vm1793, %v1778, %v1780
      %v1797 = vsel %vm1793, %v1780, %v1782
      %v1798 = vsel %vm1793, %v1782, %v1784
      %v1799 = vsel %vm1793, %v1784, %v1786
      %v1800 = vsel %vm1793, %v1786, %v1788
      %v1801 = vsel %vm1793, %v1788, %v1790
      %v1802 = vsel %vm1793, %v1790, %v1792
      %v1804 = vsel %vm237, %v1749, 0
      %v1806 = vsel %vm241, %v1794, 0
      %v1808 = vsel %vm241, %v1795, 0
      %v1810 = vsel %vm241, %v1796, 0
      %v1812 = vsel %vm241, %v1797, 0
      %v1814 = vsel %vm241, %v1798, 0
      %v1816 = vsel %vm241, %v1799, 0
      %v1818 = vsel %vm241, %v1800, 0
      %v1820 = vsel %vm241, %v1801, 0
      %v1822 = vsel %vm241, %v1802, 0
      %1824 = vmatpush.msra.mxu0 0.0
      %1825 = vmatpush.msra.mxu0 0.0
      %1826 = vmatpush.msra.mxu0 0.0
      %1827 = vmatpush.msra.mxu0 0.0
      %1828 = vmatpush.msra.mxu0 0.0
      %1829 = vmatpush.msra.mxu0 0.0
      %1830 = vmatpush.msra.mxu0 0.0
      %1831 = vmatpush.msra.mxu0 0.0
      %1832 = vmatpush.msra.mxu0 0.0
      %1833 = vmatpush.msra.mxu0 0.0
      %1834 = vmatpush.msra.mxu0 0.0
      %1835 = vmatpush.msra.mxu0 0.0
      %1836 = vmatpush.msra.mxu0 0.0
      %1837 = vmatpush.msra.mxu0 0.0
      %1838 = vmatpush.msra.mxu0 0.0
      %1839 = vmatpush.msra.mxu0 %v1806
      %1840 = vmatmul.f32.gmra.mxu0 %v1804
      %v1841 = vpop.f32.mrf.mxu0
      %v1842 = vadd.f32 0.0, %v1841
      %1843 = vdwg.mxu0
      %1844 = vmatpush.msra.mxu0 0.0
      %1845 = vmatpush.msra.mxu0 0.0
      %1846 = vmatpush.msra.mxu0 0.0
      %1847 = vmatpush.msra.mxu0 0.0
      %1848 = vmatpush.msra.mxu0 0.0
      %1849 = vmatpush.msra.mxu0 0.0
      %1850 = vmatpush.msra.mxu0 0.0
      %1851 = vmatpush.msra.mxu0 0.0
      %1852 = vmatpush.msra.mxu0 0.0
      %1853 = vmatpush.msra.mxu0 0.0
      %1854 = vmatpush.msra.mxu0 0.0
      %1855 = vmatpush.msra.mxu0 0.0
      %1856 = vmatpush.msra.mxu0 0.0
      %1857 = vmatpush.msra.mxu0 0.0
      %1858 = vmatpush.msra.mxu0 0.0
      %1859 = vmatpush.msra.mxu0 %v1808
      %1860 = vmatmul.f32.gmra.mxu0 %v1804
      %v1861 = vpop.f32.mrf.mxu0
      %v1862 = vadd.f32 0.0, %v1861
      %1863 = vdwg.mxu0
      %1864 = vmatpush.msra.mxu0 0.0
      %1865 = vmatpush.msra.mxu0 0.0
      %1866 = vmatpush.msra.mxu0 0.0
      %1867 = vmatpush.msra.mxu0 0.0
      %1868 = vmatpush.msra.mxu0 0.0
      %1869 = vmatpush.msra.mxu0 0.0
      %1870 = vmatpush.msra.mxu0 0.0
      %1871 = vmatpush.msra.mxu0 0.0
      %1872 = vmatpush.msra.mxu0 0.0
      %1873 = vmatpush.msra.mxu0 0.0
      %1874 = vmatpush.msra.mxu0 0.0
      %1875 = vmatpush.msra.mxu0 0.0
      %1876 = vmatpush.msra.mxu0 0.0
      %1877 = vmatpush.msra.mxu0 0.0
      %1878 = vmatpush.msra.mxu0 0.0
      %1879 = vmatpush.msra.mxu0 %v1810
      %1880 = vmatmul.f32.gmra.mxu0 %v1804
      %v1881 = vpop.f32.mrf.mxu0
      %v1882 = vadd.f32 0.0, %v1881
      %1883 = vdwg.mxu0
      %1884 = vmatpush.msra.mxu0 0.0
      %1885 = vmatpush.msra.mxu0 0.0
      %1886 = vmatpush.msra.mxu0 0.0
      %1887 = vmatpush.msra.mxu0 0.0
      %1888 = vmatpush.msra.mxu0 0.0
      %1889 = vmatpush.msra.mxu0 0.0
      %1890 = vmatpush.msra.mxu0 0.0
      %1891 = vmatpush.msra.mxu0 0.0
      %1892 = vmatpush.msra.mxu0 0.0
      %1893 = vmatpush.msra.mxu0 0.0
      %1894 = vmatpush.msra.mxu0 0.0
      %1895 = vmatpush.msra.mxu0 0.0
      %1896 = vmatpush.msra.mxu0 0.0
      %1897 = vmatpush.msra.mxu0 0.0
      %1898 = vmatpush.msra.mxu0 0.0
      %1899 = vmatpush.msra.mxu0 %v1812
      %1900 = vmatmul.f32.gmra.mxu0 %v1804
      %v1901 = vpop.f32.mrf.mxu0
      %v1902 = vadd.f32 0.0, %v1901
      %1903 = vdwg.mxu0
      %1904 = vmatpush.msra.mxu0 0.0
      %1905 = vmatpush.msra.mxu0 0.0
      %1906 = vmatpush.msra.mxu0 0.0
      %1907 = vmatpush.msra.mxu0 0.0
      %1908 = vmatpush.msra.mxu0 0.0
      %1909 = vmatpush.msra.mxu0 0.0
      %1910 = vmatpush.msra.mxu0 0.0
      %1911 = vmatpush.msra.mxu0 0.0
      %1912 = vmatpush.msra.mxu0 0.0
      %1913 = vmatpush.msra.mxu0 0.0
      %1914 = vmatpush.msra.mxu0 0.0
      %1915 = vmatpush.msra.mxu0 0.0
      %1916 = vmatpush.msra.mxu0 0.0
      %1917 = vmatpush.msra.mxu0 0.0
      %1918 = vmatpush.msra.mxu0 0.0
      %1919 = vmatpush.msra.mxu0 %v1814
      %1920 = vmatmul.f32.gmra.mxu0 %v1804
      %v1921 = vpop.f32.mrf.mxu0
      %v1922 = vadd.f32 0.0, %v1921
      %1923 = vdwg.mxu0
      %1924 = vmatpush.msra.mxu0 0.0
      %1925 = vmatpush.msra.mxu0 0.0
      %1926 = vmatpush.msra.mxu0 0.0
      %1927 = vmatpush.msra.mxu0 0.0
      %1928 = vmatpush.msra.mxu0 0.0
      %1929 = vmatpush.msra.mxu0 0.0
      %1930 = vmatpush.msra.mxu0 0.0
      %1931 = vmatpush.msra.mxu0 0.0
      %1932 = vmatpush.msra.mxu0 0.0
      %1933 = vmatpush.msra.mxu0 0.0
      %1934 = vmatpush.msra.mxu0 0.0
      %1935 = vmatpush.msra.mxu0 0.0
      %1936 = vmatpush.msra.mxu0 0.0
      %1937 = vmatpush.msra.mxu0 0.0
      %1938 = vmatpush.msra.mxu0 0.0
      %1939 = vmatpush.msra.mxu0 %v1816
      %1940 = vmatmul.f32.gmra.mxu0 %v1804
      %v1941 = vpop.f32.mrf.mxu0
      %v1942 = vadd.f32 0.0, %v1941
      %1943 = vdwg.mxu0
      %1944 = vmatpush.msra.mxu0 0.0
      %1945 = vmatpush.msra.mxu0 0.0
      %1946 = vmatpush.msra.mxu0 0.0
      %1947 = vmatpush.msra.mxu0 0.0
      %1948 = vmatpush.msra.mxu0 0.0
      %1949 = vmatpush.msra.mxu0 0.0
      %1950 = vmatpush.msra.mxu0 0.0
      %1951 = vmatpush.msra.mxu0 0.0
      %1952 = vmatpush.msra.mxu0 0.0
      %1953 = vmatpush.msra.mxu0 0.0
      %1954 = vmatpush.msra.mxu0 0.0
      %1955 = vmatpush.msra.mxu0 0.0
      %1956 = vmatpush.msra.mxu0 0.0
      %1957 = vmatpush.msra.mxu0 0.0
      %1958 = vmatpush.msra.mxu0 0.0
      %1959 = vmatpush.msra.mxu0 %v1818
      %1960 = vmatmul.f32.gmra.mxu0 %v1804
      %v1961 = vpop.f32.mrf.mxu0
      %v1962 = vadd.f32 0.0, %v1961
      %1963 = vdwg.mxu0
      %1964 = vmatpush.msra.mxu0 0.0
      %1965 = vmatpush.msra.mxu0 0.0
      %1966 = vmatpush.msra.mxu0 0.0
      %1967 = vmatpush.msra.mxu0 0.0
      %1968 = vmatpush.msra.mxu0 0.0
      %1969 = vmatpush.msra.mxu0 0.0
      %1970 = vmatpush.msra.mxu0 0.0
      %1971 = vmatpush.msra.mxu0 0.0
      %1972 = vmatpush.msra.mxu0 0.0
      %1973 = vmatpush.msra.mxu0 0.0
      %1974 = vmatpush.msra.mxu0 0.0
      %1975 = vmatpush.msra.mxu0 0.0
      %1976 = vmatpush.msra.mxu0 0.0
      %1977 = vmatpush.msra.mxu0 0.0
      %1978 = vmatpush.msra.mxu0 0.0
      %1979 = vmatpush.msra.mxu0 %v1820
      %1980 = vmatmul.f32.gmra.mxu0 %v1804
      %v1981 = vpop.f32.mrf.mxu0
      %v1982 = vadd.f32 0.0, %v1981
      %1983 = vdwg.mxu0
      %1984 = vmatpush.msra.mxu0 0.0
      %1985 = vmatpush.msra.mxu0 0.0
      %1986 = vmatpush.msra.mxu0 0.0
      %1987 = vmatpush.msra.mxu0 0.0
      %1988 = vmatpush.msra.mxu0 0.0
      %1989 = vmatpush.msra.mxu0 0.0
      %1990 = vmatpush.msra.mxu0 0.0
      %1991 = vmatpush.msra.mxu0 0.0
      %1992 = vmatpush.msra.mxu0 0.0
      %1993 = vmatpush.msra.mxu0 0.0
      %1994 = vmatpush.msra.mxu0 0.0
      %1995 = vmatpush.msra.mxu0 0.0
      %1996 = vmatpush.msra.mxu0 0.0
      %1997 = vmatpush.msra.mxu0 0.0
      %1998 = vmatpush.msra.mxu0 0.0
      %1999 = vmatpush.msra.mxu0 %v1822
      %2000 = vmatmul.f32.gmra.mxu0 %v1804
      %v2001 = vpop.f32.mrf.mxu0
      %v2002 = vadd.f32 0.0, %v2001
      %2003 = vdwg.mxu0
      %v2004 = vadd.f32 %v1734, %v1842
      %v2005 = vadd.f32 %v1735, %v1862
      %v2006 = vadd.f32 %v1736, %v1882
      %v2007 = vadd.f32 %v1737, %v1902
      %v2008 = vadd.f32 %v1738, %v1922
      %v2009 = vadd.f32 %v1739, %v1942
      %v2010 = vadd.f32 %v1740, %v1962
      %v2011 = vadd.f32 %v1741, %v1982
      %v2012 = vadd.f32 %v1742, %v2002
      %v2013 = vld [vmem:[%s165] sm:$0xff]
      %v2014 = vld [vmem:[%s165 + $0x8] sm:$0xff]
      %v2015 = vld [vmem:[%s165 + $0x10] sm:$0xff]
      %v2016 = vld [vmem:[%s165 + $0x18] sm:$0xff]
      %v2017 = vld [vmem:[%s165 + $0x20] sm:$0xff]
      %s2018 = scalar_lea.vmem %s1, 56
      %v2019 = vld [vmem:[%s2018] sm:$0xff]
      %2025 = vst [vmem:[#allocation1] ss:$2 sm:$0xff] %v2013
      %s2026 = scalar_lea.vmem [#allocation1], 16
      %2027 = vst [vmem:[%s2026] ss:$2 sm:$0xff] %v2014
      %s2028 = scalar_lea.vmem [#allocation1], 32
      %2029 = vst [vmem:[%s2028] ss:$2 sm:$0xff] %v2015
      %s2030 = scalar_lea.vmem [#allocation1], 48
      %2031 = vst [vmem:[%s2030] ss:$2 sm:$0xff] %v2016
      %v2032 = vld.sshfl [vmem:[#allocation1] sm:$0xff pattern:$0x75316420]
      %v2033 = vld.sshfl [vmem:[#allocation1 + $0x8] sm:$0xff pattern:$0x75316420]
      %v2034 = vld.sshfl [vmem:[#allocation1 + $0x10] sm:$0xff pattern:$0x75316420]
      %v2035 = vld.sshfl [vmem:[#allocation1 + $0x18] sm:$0xff pattern:$0x75316420]
      %v2036 = vld.sshfl [vmem:[#allocation1 + $0x20] sm:$0xff pattern:$0x75316420]
      %v2037 = vld.sshfl [vmem:[#allocation1 + $0x28] sm:$0xff pattern:$0x75316420]
      %v2038 = vld.sshfl [vmem:[#allocation1 + $0x30] sm:$0xff pattern:$0x75316420]
      %v2039 = vld.sshfl [vmem:[#allocation1 + $0x38] sm:$0xff pattern:$0x75316420]
      %2040 = vst [vmem:[#allocation1] ss:$2 sm:$0xff] %v2017
      %v2041 = vld.sshfl [vmem:[#allocation1] sm:$0xff pattern:$0x75316420]
      %v2042 = vld.sshfl [vmem:[#allocation1 + $0x8] sm:$0xff pattern:$0x75316420]
      %2043 = vrot.lane.b32.xlu0 %v2032, 59
      %v2044 = vpop.permute.xlu0 %2043
      %2045 = vrot.lane.b32.xlu0 %v2033, 59
      %v2046 = vpop.permute.xlu0 %2045
      %2047 = vrot.lane.b32.xlu0 %v2034, 59
      %v2048 = vpop.permute.xlu0 %2047
      %2049 = vrot.lane.b32.xlu0 %v2035, 59
      %v2050 = vpop.permute.xlu0 %2049
      %2051 = vrot.lane.b32.xlu0 %v2036, 59
      %v2052 = vpop.permute.xlu0 %2051
      %2053 = vrot.lane.b32.xlu0 %v2037, 59
      %v2054 = vpop.permute.xlu0 %2053
      %2055 = vrot.lane.b32.xlu0 %v2038, 59
      %v2056 = vpop.permute.xlu0 %2055
      %2057 = vrot.lane.b32.xlu0 %v2039, 59
      %v2058 = vpop.permute.xlu0 %2057
      %2059 = vrot.lane.b32.xlu0 %v2041, 59
      %v2060 = vpop.permute.xlu0 %2059
      %2061 = vrot.lane.b32.xlu0 %v2042, 59
      %v2062 = vpop.permute.xlu0 %2061
      %vm2063 = vcmask 482304
      %v2064 = vsel %vm2063, %v2044, %v2046
      %v2065 = vsel %vm2063, %v2046, %v2048
      %v2066 = vsel %vm2063, %v2048, %v2050
      %v2067 = vsel %vm2063, %v2050, %v2052
      %v2068 = vsel %vm2063, %v2052, %v2054
      %v2069 = vsel %vm2063, %v2054, %v2056
      %v2070 = vsel %vm2063, %v2056, %v2058
      %v2071 = vsel %vm2063, %v2058, %v2060
      %v2072 = vsel %vm2063, %v2060, %v2062
      %v2074 = vsel %vm237, %v2019, 0
      %v2076 = vsel %vm241, %v2064, 0
      %v2078 = vsel %vm241, %v2065, 0
      %v2080 = vsel %vm241, %v2066, 0
      %v2082 = vsel %vm241, %v2067, 0
      %v2084 = vsel %vm241, %v2068, 0
      %v2086 = vsel %vm241, %v2069, 0
      %v2088 = vsel %vm241, %v2070, 0
      %v2090 = vsel %vm241, %v2071, 0
      %v2092 = vsel %vm241, %v2072, 0
      %2094 = vmatpush.msra.mxu0 0.0
      %2095 = vmatpush.msra.mxu0 0.0
      %2096 = vmatpush.msra.mxu0 0.0
      %2097 = vmatpush.msra.mxu0 0.0
      %2098 = vmatpush.msra.mxu0 0.0
      %2099 = vmatpush.msra.mxu0 0.0
      %2100 = vmatpush.msra.mxu0 0.0
      %2101 = vmatpush.msra.mxu0 0.0
      %2102 = vmatpush.msra.mxu0 0.0
      %2103 = vmatpush.msra.mxu0 0.0
      %2104 = vmatpush.msra.mxu0 0.0
      %2105 = vmatpush.msra.mxu0 0.0
      %2106 = vmatpush.msra.mxu0 0.0
      %2107 = vmatpush.msra.mxu0 0.0
      %2108 = vmatpush.msra.mxu0 0.0
      %2109 = vmatpush.msra.mxu0 %v2076
      %2110 = vmatmul.f32.gmra.mxu0 %v2074
      %v2111 = vpop.f32.mrf.mxu0
      %v2112 = vadd.f32 0.0, %v2111
      %2113 = vdwg.mxu0
      %2114 = vmatpush.msra.mxu0 0.0
      %2115 = vmatpush.msra.mxu0 0.0
      %2116 = vmatpush.msra.mxu0 0.0
      %2117 = vmatpush.msra.mxu0 0.0
      %2118 = vmatpush.msra.mxu0 0.0
      %2119 = vmatpush.msra.mxu0 0.0
      %2120 = vmatpush.msra.mxu0 0.0
      %2121 = vmatpush.msra.mxu0 0.0
      %2122 = vmatpush.msra.mxu0 0.0
      %2123 = vmatpush.msra.mxu0 0.0
      %2124 = vmatpush.msra.mxu0 0.0
      %2125 = vmatpush.msra.mxu0 0.0
      %2126 = vmatpush.msra.mxu0 0.0
      %2127 = vmatpush.msra.mxu0 0.0
      %2128 = vmatpush.msra.mxu0 0.0
      %2129 = vmatpush.msra.mxu0 %v2078
      %2130 = vmatmul.f32.gmra.mxu0 %v2074
      %v2131 = vpop.f32.mrf.mxu0
      %v2132 = vadd.f32 0.0, %v2131
      %2133 = vdwg.mxu0
      %2134 = vmatpush.msra.mxu0 0.0
      %2135 = vmatpush.msra.mxu0 0.0
      %2136 = vmatpush.msra.mxu0 0.0
      %2137 = vmatpush.msra.mxu0 0.0
      %2138 = vmatpush.msra.mxu0 0.0
      %2139 = vmatpush.msra.mxu0 0.0
      %2140 = vmatpush.msra.mxu0 0.0
      %2141 = vmatpush.msra.mxu0 0.0
      %2142 = vmatpush.msra.mxu0 0.0
      %2143 = vmatpush.msra.mxu0 0.0
      %2144 = vmatpush.msra.mxu0 0.0
      %2145 = vmatpush.msra.mxu0 0.0
      %2146 = vmatpush.msra.mxu0 0.0
      %2147 = vmatpush.msra.mxu0 0.0
      %2148 = vmatpush.msra.mxu0 0.0
      %2149 = vmatpush.msra.mxu0 %v2080
      %2150 = vmatmul.f32.gmra.mxu0 %v2074
      %v2151 = vpop.f32.mrf.mxu0
      %v2152 = vadd.f32 0.0, %v2151
      %2153 = vdwg.mxu0
      %2154 = vmatpush.msra.mxu0 0.0
      %2155 = vmatpush.msra.mxu0 0.0
      %2156 = vmatpush.msra.mxu0 0.0
      %2157 = vmatpush.msra.mxu0 0.0
      %2158 = vmatpush.msra.mxu0 0.0
      %2159 = vmatpush.msra.mxu0 0.0
      %2160 = vmatpush.msra.mxu0 0.0
      %2161 = vmatpush.msra.mxu0 0.0
      %2162 = vmatpush.msra.mxu0 0.0
      %2163 = vmatpush.msra.mxu0 0.0
      %2164 = vmatpush.msra.mxu0 0.0
      %2165 = vmatpush.msra.mxu0 0.0
      %2166 = vmatpush.msra.mxu0 0.0
      %2167 = vmatpush.msra.mxu0 0.0
      %2168 = vmatpush.msra.mxu0 0.0
      %2169 = vmatpush.msra.mxu0 %v2082
      %2170 = vmatmul.f32.gmra.mxu0 %v2074
      %v2171 = vpop.f32.mrf.mxu0
      %v2172 = vadd.f32 0.0, %v2171
      %2173 = vdwg.mxu0
      %2174 = vmatpush.msra.mxu0 0.0
      %2175 = vmatpush.msra.mxu0 0.0
      %2176 = vmatpush.msra.mxu0 0.0
      %2177 = vmatpush.msra.mxu0 0.0
      %2178 = vmatpush.msra.mxu0 0.0
      %2179 = vmatpush.msra.mxu0 0.0
      %2180 = vmatpush.msra.mxu0 0.0
      %2181 = vmatpush.msra.mxu0 0.0
      %2182 = vmatpush.msra.mxu0 0.0
      %2183 = vmatpush.msra.mxu0 0.0
      %2184 = vmatpush.msra.mxu0 0.0
      %2185 = vmatpush.msra.mxu0 0.0
      %2186 = vmatpush.msra.mxu0 0.0
      %2187 = vmatpush.msra.mxu0 0.0
      %2188 = vmatpush.msra.mxu0 0.0
      %2189 = vmatpush.msra.mxu0 %v2084
      %2190 = vmatmul.f32.gmra.mxu0 %v2074
      %v2191 = vpop.f32.mrf.mxu0
      %v2192 = vadd.f32 0.0, %v2191
      %2193 = vdwg.mxu0
      %2194 = vmatpush.msra.mxu0 0.0
      %2195 = vmatpush.msra.mxu0 0.0
      %2196 = vmatpush.msra.mxu0 0.0
      %2197 = vmatpush.msra.mxu0 0.0
      %2198 = vmatpush.msra.mxu0 0.0
      %2199 = vmatpush.msra.mxu0 0.0
      %2200 = vmatpush.msra.mxu0 0.0
      %2201 = vmatpush.msra.mxu0 0.0
      %2202 = vmatpush.msra.mxu0 0.0
      %2203 = vmatpush.msra.mxu0 0.0
      %2204 = vmatpush.msra.mxu0 0.0
      %2205 = vmatpush.msra.mxu0 0.0
      %2206 = vmatpush.msra.mxu0 0.0
      %2207 = vmatpush.msra.mxu0 0.0
      %2208 = vmatpush.msra.mxu0 0.0
      %2209 = vmatpush.msra.mxu0 %v2086
      %2210 = vmatmul.f32.gmra.mxu0 %v2074
      %v2211 = vpop.f32.mrf.mxu0
      %v2212 = vadd.f32 0.0, %v2211
      %2213 = vdwg.mxu0
      %2214 = vmatpush.msra.mxu0 0.0
      %2215 = vmatpush.msra.mxu0 0.0
      %2216 = vmatpush.msra.mxu0 0.0
      %2217 = vmatpush.msra.mxu0 0.0
      %2218 = vmatpush.msra.mxu0 0.0
      %2219 = vmatpush.msra.mxu0 0.0
      %2220 = vmatpush.msra.mxu0 0.0
      %2221 = vmatpush.msra.mxu0 0.0
      %2222 = vmatpush.msra.mxu0 0.0
      %2223 = vmatpush.msra.mxu0 0.0
      %2224 = vmatpush.msra.mxu0 0.0
      %2225 = vmatpush.msra.mxu0 0.0
      %2226 = vmatpush.msra.mxu0 0.0
      %2227 = vmatpush.msra.mxu0 0.0
      %2228 = vmatpush.msra.mxu0 0.0
      %2229 = vmatpush.msra.mxu0 %v2088
      %2230 = vmatmul.f32.gmra.mxu0 %v2074
      %v2231 = vpop.f32.mrf.mxu0
      %v2232 = vadd.f32 0.0, %v2231
      %2233 = vdwg.mxu0
      %2234 = vmatpush.msra.mxu0 0.0
      %2235 = vmatpush.msra.mxu0 0.0
      %2236 = vmatpush.msra.mxu0 0.0
      %2237 = vmatpush.msra.mxu0 0.0
      %2238 = vmatpush.msra.mxu0 0.0
      %2239 = vmatpush.msra.mxu0 0.0
      %2240 = vmatpush.msra.mxu0 0.0
      %2241 = vmatpush.msra.mxu0 0.0
      %2242 = vmatpush.msra.mxu0 0.0
      %2243 = vmatpush.msra.mxu0 0.0
      %2244 = vmatpush.msra.mxu0 0.0
      %2245 = vmatpush.msra.mxu0 0.0
      %2246 = vmatpush.msra.mxu0 0.0
      %2247 = vmatpush.msra.mxu0 0.0
      %2248 = vmatpush.msra.mxu0 0.0
      %2249 = vmatpush.msra.mxu0 %v2090
      %2250 = vmatmul.f32.gmra.mxu0 %v2074
      %v2251 = vpop.f32.mrf.mxu0
      %v2252 = vadd.f32 0.0, %v2251
      %2253 = vdwg.mxu0
      %2254 = vmatpush.msra.mxu0 0.0
      %2255 = vmatpush.msra.mxu0 0.0
      %2256 = vmatpush.msra.mxu0 0.0
      %2257 = vmatpush.msra.mxu0 0.0
      %2258 = vmatpush.msra.mxu0 0.0
      %2259 = vmatpush.msra.mxu0 0.0
      %2260 = vmatpush.msra.mxu0 0.0
      %2261 = vmatpush.msra.mxu0 0.0
      %2262 = vmatpush.msra.mxu0 0.0
      %2263 = vmatpush.msra.mxu0 0.0
      %2264 = vmatpush.msra.mxu0 0.0
      %2265 = vmatpush.msra.mxu0 0.0
      %2266 = vmatpush.msra.mxu0 0.0
      %2267 = vmatpush.msra.mxu0 0.0
      %2268 = vmatpush.msra.mxu0 0.0
      %2269 = vmatpush.msra.mxu0 %v2092
      %2270 = vmatmul.f32.gmra.mxu0 %v2074
      %v2271 = vpop.f32.mrf.mxu0
      %v2272 = vadd.f32 0.0, %v2271
      %2273 = vdwg.mxu0
      %v2274 = vadd.f32 %v2004, %v2112
      %v2275 = vadd.f32 %v2005, %v2132
      %v2276 = vadd.f32 %v2006, %v2152
      %v2277 = vadd.f32 %v2007, %v2172
      %v2278 = vadd.f32 %v2008, %v2192
      %v2279 = vadd.f32 %v2009, %v2212
      %v2280 = vadd.f32 %v2010, %v2232
      %v2281 = vadd.f32 %v2011, %v2252
      %v2282 = vadd.f32 %v2012, %v2272
      %v2283 = vld [vmem:[%s165] sm:$0xff]
      %v2284 = vld [vmem:[%s165 + $0x8] sm:$0xff]
      %v2285 = vld [vmem:[%s165 + $0x10] sm:$0xff]
      %v2286 = vld [vmem:[%s165 + $0x18] sm:$0xff]
      %v2287 = vld [vmem:[%s165 + $0x20] sm:$0xff]
      %s2288 = scalar_lea.vmem %s1, 64
      %v2289 = vld [vmem:[%s2288] sm:$0xff]
      %2295 = vst [vmem:[#allocation1] ss:$2 sm:$0xff] %v2283
      %s2296 = scalar_lea.vmem [#allocation1], 16
      %2297 = vst [vmem:[%s2296] ss:$2 sm:$0xff] %v2284
      %s2298 = scalar_lea.vmem [#allocation1], 32
      %2299 = vst [vmem:[%s2298] ss:$2 sm:$0xff] %v2285
      %s2300 = scalar_lea.vmem [#allocation1], 48
      %2301 = vst [vmem:[%s2300] ss:$2 sm:$0xff] %v2286
      %v2302 = vld.sshfl [vmem:[#allocation1] sm:$0xff pattern:$0x75316420]
      %v2303 = vld.sshfl [vmem:[#allocation1 + $0x8] sm:$0xff pattern:$0x75316420]
      %v2304 = vld.sshfl [vmem:[#allocation1 + $0x10] sm:$0xff pattern:$0x75316420]
      %v2305 = vld.sshfl [vmem:[#allocation1 + $0x18] sm:$0xff pattern:$0x75316420]
      %v2306 = vld.sshfl [vmem:[#allocation1 + $0x20] sm:$0xff pattern:$0x75316420]
      %v2307 = vld.sshfl [vmem:[#allocation1 + $0x28] sm:$0xff pattern:$0x75316420]
      %v2308 = vld.sshfl [vmem:[#allocation1 + $0x30] sm:$0xff pattern:$0x75316420]
      %v2309 = vld.sshfl [vmem:[#allocation1 + $0x38] sm:$0xff pattern:$0x75316420]
      %2310 = vst [vmem:[#allocation1] ss:$2 sm:$0xff] %v2287
      %v2311 = vld.sshfl [vmem:[#allocation1] sm:$0xff pattern:$0x75316420]
      %v2312 = vld.sshfl [vmem:[#allocation1 + $0x8] sm:$0xff pattern:$0x75316420]
      %2313 = vrot.lane.b32.xlu0 %v2302, 58
      %v2314 = vpop.permute.xlu0 %2313
      %2315 = vrot.lane.b32.xlu0 %v2303, 58
      %v2316 = vpop.permute.xlu0 %2315
      %2317 = vrot.lane.b32.xlu0 %v2304, 58
      %v2318 = vpop.permute.xlu0 %2317
      %2319 = vrot.lane.b32.xlu0 %v2305, 58
      %v2320 = vpop.permute.xlu0 %2319
      %2321 = vrot.lane.b32.xlu0 %v2306, 58
      %v2322 = vpop.permute.xlu0 %2321
      %2323 = vrot.lane.b32.xlu0 %v2307, 58
      %v2324 = vpop.permute.xlu0 %2323
      %2325 = vrot.lane.b32.xlu0 %v2308, 58
      %v2326 = vpop.permute.xlu0 %2325
      %2327 = vrot.lane.b32.xlu0 %v2309, 58
      %v2328 = vpop.permute.xlu0 %2327
      %2329 = vrot.lane.b32.xlu0 %v2311, 58
      %v2330 = vpop.permute.xlu0 %2329
      %2331 = vrot.lane.b32.xlu0 %v2312, 58
      %v2332 = vpop.permute.xlu0 %2331
      %vm2333 = vcmask 474112
      %v2334 = vsel %vm2333, %v2314, %v2316
      %v2335 = vsel %vm2333, %v2316, %v2318
      %v2336 = vsel %vm2333, %v2318, %v2320
      %v2337 = vsel %vm2333, %v2320, %v2322
      %v2338 = vsel %vm2333, %v2322, %v2324
      %v2339 = vsel %vm2333, %v2324, %v2326
      %v2340 = vsel %vm2333, %v2326, %v2328
      %v2341 = vsel %vm2333, %v2328, %v2330
      %v2342 = vsel %vm2333, %v2330, %v2332
      %v2344 = vsel %vm237, %v2289, 0
      %v2346 = vsel %vm241, %v2334, 0
      %v2348 = vsel %vm241, %v2335, 0
      %v2350 = vsel %vm241, %v2336, 0
      %v2352 = vsel %vm241, %v2337, 0
      %v2354 = vsel %vm241, %v2338, 0
      %v2356 = vsel %vm241, %v2339, 0
      %v2358 = vsel %vm241, %v2340, 0
      %v2360 = vsel %vm241, %v2341, 0
      %v2362 = vsel %vm241, %v2342, 0
      %2364 = vmatpush.msra.mxu0 0.0
      %2365 = vmatpush.msra.mxu0 0.0
      %2366 = vmatpush.msra.mxu0 0.0
      %2367 = vmatpush.msra.mxu0 0.0
      %2368 = vmatpush.msra.mxu0 0.0
      %2369 = vmatpush.msra.mxu0 0.0
      %2370 = vmatpush.msra.mxu0 0.0
      %2371 = vmatpush.msra.mxu0 0.0
      %2372 = vmatpush.msra.mxu0 0.0
      %2373 = vmatpush.msra.mxu0 0.0
      %2374 = vmatpush.msra.mxu0 0.0
      %2375 = vmatpush.msra.mxu0 0.0
      %2376 = vmatpush.msra.mxu0 0.0
      %2377 = vmatpush.msra.mxu0 0.0
      %2378 = vmatpush.msra.mxu0 0.0
      %2379 = vmatpush.msra.mxu0 %v2346
      %2380 = vmatmul.f32.gmra.mxu0 %v2344
      %v2381 = vpop.f32.mrf.mxu0
      %v2382 = vadd.f32 0.0, %v2381
      %2383 = vdwg.mxu0
      %2384 = vmatpush.msra.mxu0 0.0
      %2385 = vmatpush.msra.mxu0 0.0
      %2386 = vmatpush.msra.mxu0 0.0
      %2387 = vmatpush.msra.mxu0 0.0
      %2388 = vmatpush.msra.mxu0 0.0
      %2389 = vmatpush.msra.mxu0 0.0
      %2390 = vmatpush.msra.mxu0 0.0
      %2391 = vmatpush.msra.mxu0 0.0
      %2392 = vmatpush.msra.mxu0 0.0
      %2393 = vmatpush.msra.mxu0 0.0
      %2394 = vmatpush.msra.mxu0 0.0
      %2395 = vmatpush.msra.mxu0 0.0
      %2396 = vmatpush.msra.mxu0 0.0
      %2397 = vmatpush.msra.mxu0 0.0
      %2398 = vmatpush.msra.mxu0 0.0
      %2399 = vmatpush.msra.mxu0 %v2348
      %2400 = vmatmul.f32.gmra.mxu0 %v2344
      %v2401 = vpop.f32.mrf.mxu0
      %v2402 = vadd.f32 0.0, %v2401
      %2403 = vdwg.mxu0
      %2404 = vmatpush.msra.mxu0 0.0
      %2405 = vmatpush.msra.mxu0 0.0
      %2406 = vmatpush.msra.mxu0 0.0
      %2407 = vmatpush.msra.mxu0 0.0
      %2408 = vmatpush.msra.mxu0 0.0
      %2409 = vmatpush.msra.mxu0 0.0
      %2410 = vmatpush.msra.mxu0 0.0
      %2411 = vmatpush.msra.mxu0 0.0
      %2412 = vmatpush.msra.mxu0 0.0
      %2413 = vmatpush.msra.mxu0 0.0
      %2414 = vmatpush.msra.mxu0 0.0
      %2415 = vmatpush.msra.mxu0 0.0
      %2416 = vmatpush.msra.mxu0 0.0
      %2417 = vmatpush.msra.mxu0 0.0
      %2418 = vmatpush.msra.mxu0 0.0
      %2419 = vmatpush.msra.mxu0 %v2350
      %2420 = vmatmul.f32.gmra.mxu0 %v2344
      %v2421 = vpop.f32.mrf.mxu0
      %v2422 = vadd.f32 0.0, %v2421
      %2423 = vdwg.mxu0
      %2424 = vmatpush.msra.mxu0 0.0
      %2425 = vmatpush.msra.mxu0 0.0
      %2426 = vmatpush.msra.mxu0 0.0
      %2427 = vmatpush.msra.mxu0 0.0
      %2428 = vmatpush.msra.mxu0 0.0
      %2429 = vmatpush.msra.mxu0 0.0
      %2430 = vmatpush.msra.mxu0 0.0
      %2431 = vmatpush.msra.mxu0 0.0
      %2432 = vmatpush.msra.mxu0 0.0
      %2433 = vmatpush.msra.mxu0 0.0
      %2434 = vmatpush.msra.mxu0 0.0
      %2435 = vmatpush.msra.mxu0 0.0
      %2436 = vmatpush.msra.mxu0 0.0
      %2437 = vmatpush.msra.mxu0 0.0
      %2438 = vmatpush.msra.mxu0 0.0
      %2439 = vmatpush.msra.mxu0 %v2352
      %2440 = vmatmul.f32.gmra.mxu0 %v2344
      %v2441 = vpop.f32.mrf.mxu0
      %v2442 = vadd.f32 0.0, %v2441
      %2443 = vdwg.mxu0
      %2444 = vmatpush.msra.mxu0 0.0
      %2445 = vmatpush.msra.mxu0 0.0
      %2446 = vmatpush.msra.mxu0 0.0
      %2447 = vmatpush.msra.mxu0 0.0
      %2448 = vmatpush.msra.mxu0 0.0
      %2449 = vmatpush.msra.mxu0 0.0
      %2450 = vmatpush.msra.mxu0 0.0
      %2451 = vmatpush.msra.mxu0 0.0
      %2452 = vmatpush.msra.mxu0 0.0
      %2453 = vmatpush.msra.mxu0 0.0
      %2454 = vmatpush.msra.mxu0 0.0
      %2455 = vmatpush.msra.mxu0 0.0
      %2456 = vmatpush.msra.mxu0 0.0
      %2457 = vmatpush.msra.mxu0 0.0
      %2458 = vmatpush.msra.mxu0 0.0
      %2459 = vmatpush.msra.mxu0 %v2354
      %2460 = vmatmul.f32.gmra.mxu0 %v2344
      %v2461 = vpop.f32.mrf.mxu0
      %v2462 = vadd.f32 0.0, %v2461
      %2463 = vdwg.mxu0
      %2464 = vmatpush.msra.mxu0 0.0
      %2465 = vmatpush.msra.mxu0 0.0
      %2466 = vmatpush.msra.mxu0 0.0
      %2467 = vmatpush.msra.mxu0 0.0
      %2468 = vmatpush.msra.mxu0 0.0
      %2469 = vmatpush.msra.mxu0 0.0
      %2470 = vmatpush.msra.mxu0 0.0
      %2471 = vmatpush.msra.mxu0 0.0
      %2472 = vmatpush.msra.mxu0 0.0
      %2473 = vmatpush.msra.mxu0 0.0
      %2474 = vmatpush.msra.mxu0 0.0
      %2475 = vmatpush.msra.mxu0 0.0
      %2476 = vmatpush.msra.mxu0 0.0
      %2477 = vmatpush.msra.mxu0 0.0
      %2478 = vmatpush.msra.mxu0 0.0
      %2479 = vmatpush.msra.mxu0 %v2356
      %2480 = vmatmul.f32.gmra.mxu0 %v2344
      %v2481 = vpop.f32.mrf.mxu0
      %v2482 = vadd.f32 0.0, %v2481
      %2483 = vdwg.mxu0
      %2484 = vmatpush.msra.mxu0 0.0
      %2485 = vmatpush.msra.mxu0 0.0
      %2486 = vmatpush.msra.mxu0 0.0
      %2487 = vmatpush.msra.mxu0 0.0
      %2488 = vmatpush.msra.mxu0 0.0
      %2489 = vmatpush.msra.mxu0 0.0
      %2490 = vmatpush.msra.mxu0 0.0
      %2491 = vmatpush.msra.mxu0 0.0
      %2492 = vmatpush.msra.mxu0 0.0
      %2493 = vmatpush.msra.mxu0 0.0
      %2494 = vmatpush.msra.mxu0 0.0
      %2495 = vmatpush.msra.mxu0 0.0
      %2496 = vmatpush.msra.mxu0 0.0
      %2497 = vmatpush.msra.mxu0 0.0
      %2498 = vmatpush.msra.mxu0 0.0
      %2499 = vmatpush.msra.mxu0 %v2358
      %2500 = vmatmul.f32.gmra.mxu0 %v2344
      %v2501 = vpop.f32.mrf.mxu0
      %v2502 = vadd.f32 0.0, %v2501
      %2503 = vdwg.mxu0
      %2504 = vmatpush.msra.mxu0 0.0
      %2505 = vmatpush.msra.mxu0 0.0
      %2506 = vmatpush.msra.mxu0 0.0
      %2507 = vmatpush.msra.mxu0 0.0
      %2508 = vmatpush.msra.mxu0 0.0
      %2509 = vmatpush.msra.mxu0 0.0
      %2510 = vmatpush.msra.mxu0 0.0
      %2511 = vmatpush.msra.mxu0 0.0
      %2512 = vmatpush.msra.mxu0 0.0
      %2513 = vmatpush.msra.mxu0 0.0
      %2514 = vmatpush.msra.mxu0 0.0
      %2515 = vmatpush.msra.mxu0 0.0
      %2516 = vmatpush.msra.mxu0 0.0
      %2517 = vmatpush.msra.mxu0 0.0
      %2518 = vmatpush.msra.mxu0 0.0
      %2519 = vmatpush.msra.mxu0 %v2360
      %2520 = vmatmul.f32.gmra.mxu0 %v2344
      %v2521 = vpop.f32.mrf.mxu0
      %v2522 = vadd.f32 0.0, %v2521
      %2523 = vdwg.mxu0
      %2524 = vmatpush.msra.mxu0 0.0
      %2525 = vmatpush.msra.mxu0 0.0
      %2526 = vmatpush.msra.mxu0 0.0
      %2527 = vmatpush.msra.mxu0 0.0
      %2528 = vmatpush.msra.mxu0 0.0
      %2529 = vmatpush.msra.mxu0 0.0
      %2530 = vmatpush.msra.mxu0 0.0
      %2531 = vmatpush.msra.mxu0 0.0
      %2532 = vmatpush.msra.mxu0 0.0
      %2533 = vmatpush.msra.mxu0 0.0
      %2534 = vmatpush.msra.mxu0 0.0
      %2535 = vmatpush.msra.mxu0 0.0
      %2536 = vmatpush.msra.mxu0 0.0
      %2537 = vmatpush.msra.mxu0 0.0
      %2538 = vmatpush.msra.mxu0 0.0
      %2539 = vmatpush.msra.mxu0 %v2362
      %2540 = vmatmul.f32.gmra.mxu0 %v2344
      %v2541 = vpop.f32.mrf.mxu0
      %v2542 = vadd.f32 0.0, %v2541
      %2543 = vdwg.mxu0
      %v2544 = vadd.f32 %v2274, %v2382
      %v2545 = vadd.f32 %v2275, %v2402
      %v2546 = vadd.f32 %v2276, %v2422
      %v2547 = vadd.f32 %v2277, %v2442
      %v2548 = vadd.f32 %v2278, %v2462
      %v2549 = vadd.f32 %v2279, %v2482
      %v2550 = vadd.f32 %v2280, %v2502
      %v2551 = vadd.f32 %v2281, %v2522
      %v2552 = vadd.f32 %v2282, %v2542
      %v2553 = vld [vmem:[%s2] sm:$0xff]
      %2555 = vset.pattern.permute.xlu0 0
      %2556 = vperm.xlu0 %2555, %v2553
      %v2557 = vpop.permute.xlu0 %2556
      %v2559 = vadd.f32 %v2544, %v2557
      %v2560 = vadd.f32 %v2545, %v2557
      %v2561 = vadd.f32 %v2546, %v2557
      %v2562 = vadd.f32 %v2547, %v2557
      %v2563 = vadd.f32 %v2548, %v2557
      %v2564 = vadd.f32 %v2549, %v2557
      %v2565 = vadd.f32 %v2550, %v2557
      %v2566 = vadd.f32 %v2551, %v2557
      %v2567 = vadd.f32 %v2552, %v2557
      %2568 = vst [vmem:[%s170] sm:$0xff] %v2559
      %2569 = vst [vmem:[%s170 + $0x8] sm:$0xff] %v2560
      %2570 = vst [vmem:[%s170 + $0x10] sm:$0xff] %v2561
      %2571 = vst [vmem:[%s170 + $0x18] sm:$0xff] %v2562
      %2572 = vst [vmem:[%s170 + $0x20] sm:$0xff] %v2563
      %2573 = vst [vmem:[%s170 + $0x28] sm:$0xff] %v2564
      %2574 = vst [vmem:[%s170 + $0x30] sm:$0xff] %v2565
      %2575 = vst [vmem:[%s170 + $0x38] sm:$0xff] %v2566
      %2576 = vst [vmem:[%s170 + $0x40] sm:$0xff] %v2567
      %p2577 = scmp.lt.s32.totalorder %s14, 1
      %s2578 = scalar_select %p2577, %s14, 1
      %s2579 = smul.addr %s2578, 9
      %s2580 = smul.addr %s2579, 8
      %s2581 = scalar_lea.vmem %s3, %s2580
      // Predicated region
      $region33: #{upsample_conv_layer.1} parent=31 // pred_check
        %p2582 = pneg %p100
      $region34: #{upsample_conv_layer.1} parent=31 // pred_check_branch
        %2584 = sbr.rel (%p2582) target = $region36
      $region35: #{upsample_conv_layer.1} parent=31 // pred_region
        _
      $region36: #{upsample_conv_layer.1} parent=31 // pred_fallthru
        _
    $region32: #{upsample_conv_layer.1} parent=5 // pred_fallthru
      _
    %p2585 = scmp.le.s32.totalorder 2, %s9
    // Predicated region
    $region37: #{upsample_conv_layer.1} parent=5 // pred_check
      %p2586 = pneg %p2585
    $region38: #{upsample_conv_layer.1} parent=5 // pred_check_branch
      %2588 = sbr.rel (%p2586) target = $region40
    $region39: #{upsample_conv_layer.1} parent=5 // pred_region
      %s2589 = ssub.s32 %s9, 2
      // Predicated region
      $region41: #{upsample_conv_layer.1} parent=39 // pred_check
        %p2590 = pneg %p106
      $region42: #{upsample_conv_layer.1} parent=39 // pred_check_branch
        %2592 = sbr.rel (%p2590) target = $region44
      $region43: #{upsample_conv_layer.1} parent=39 // pred_region
        %p2593 = scmp.lt.s32.totalorder %s15, 1
        %s2594 = scalar_select %p2593, %s15, 1
        %s2595 = smul.addr %s2594, 9
        %s2596 = smul.addr %s2595, 8
        %s2597 = scalar_lea.vmem %s3, %s2596
      $region44: #{upsample_conv_layer.1} parent=39 // pred_fallthru
        _
    $region40: #{upsample_conv_layer.1} parent=5 // pred_fallthru
      _
  $region6: #{upsample_conv_layer.1} parent=0 // loop_footer
    %s13 = sadd.s32 1, %s9
  $region7: #{upsample_conv_layer.1} parent=0 // loop_footer_branch
    %8 = sbr.rel target = $region3
  $region8: #{upsample_conv_layer.1} parent=0 // loop_exit
    _

</llo_original>
